<compile_context>
chip_gen: v7x
topology: tpu7x:2x2x1
jax: 0.10.0
libtpu: 0.0.40
codegen_flags: <defaults>
</compile_context>

<pallas_src>
import jax
import jax.numpy as jnp
from jax import lax
from jax.experimental import pallas as pl
from jax.experimental.pallas import tpu as pltpu


def _round_up(n, m):
    return ((n + m - 1) // m) * m


def at_kernel(x_ref,       # (S, TB, E)  f32   time-major sentence embeddings (batch tile)
              sv_ref,      # (TB, 1)     f32   aspect-branch score term (incl. alpha bias)
              wih_ref,     # (E, 4H)     bf16  LSTM weight_ih.T
              whh_ref,     # (H, 4H)     bf16  LSTM weight_hh.T
              w1_ref,      # (H, H)      bf16  M_linear_first.weight.T
              wfs_ref,     # (2H, H)     bf16  [h_ast_linear_first.T ; h_ast_linear_second.T]
              wc_ref,      # (H, P)      bf16  classification.weight.T
              brow_ref,    # (8, BW)     f32   packed biases + alpha_linear hidden row
              out_ref,     # (TB, OW)    f32   output slab [logits | alpha | pad]
              xw_scratch,  # (S*TB, 4H)  f32   VMEM: hoisted input projection
              h_scratch):  # (S*TB, H)   f32   VMEM: all LSTM hidden states (time-major)
    S, TB, E = x_ref.shape
    H = whh_ref.shape[0]
    P = wc_ref.shape[1]
    OW = out_ref.shape[1]

    # ---- unpack consolidated f32 row block ----
    bl = brow_ref[0:1, 0:4 * H]      # LSTM bias_ih + bias_hh
    b1 = brow_ref[1:2, 0:H]          # M_linear_first bias
    wa_h = brow_ref[2:3, 0:H]        # alpha_linear weight, hidden part (row)
    bfs = brow_ref[3:4, 0:H]         # h_ast_linear_first.bias + h_ast_linear_second.bias
    bc = brow_ref[4:5, 0:P]          # classification bias

    # ---- hoisted input projection: one big bf16 MXU matmul -> explicit scratch ----
    x2 = x_ref[...].reshape(S * TB, E).astype(jnp.bfloat16)
    xw_scratch[...] = (jnp.dot(x2, wih_ref[...],
                               preferred_element_type=jnp.float32) + bl)

    # ---- LSTM recurrence (PyTorch gate order i, f, g, o), static unroll ----
    whh = whh_ref[...]
    h = jnp.zeros((TB, H), jnp.float32)
    c = jnp.zeros((TB, H), jnp.float32)
    for t in range(S):                                   # S is static
        gates = xw_scratch[t * TB:(t + 1) * TB, :] + jnp.dot(
            h.astype(jnp.bfloat16), whh, preferred_element_type=jnp.float32)
        sg = jax.nn.sigmoid(gates)                       # one full-lane EUP pass
        tg = jnp.tanh(gates)                             # one full-lane EUP pass
        i_g = sg[:, 0:H]
        f_g = sg[:, H:2 * H]
        o_g = sg[:, 3 * H:4 * H]
        g_g = tg[:, 2 * H:3 * H]
        c = f_g * c + i_g * g_g
        h = o_g * jnp.tanh(c)
        h_scratch[t * TB:(t + 1) * TB, :] = h

    h_n = h                                              # (TB, H)
    hs2 = h_scratch[...]                                 # (S*TB, H) f32

    # ---- attention scores, kept in (S, TB, 1) column orientation ----
    wh = jnp.tanh(jnp.dot(hs2.astype(jnp.bfloat16), w1_ref[...],
                          preferred_element_type=jnp.float32) + b1)   # (S*TB, H)
    score = jnp.sum(wh * wa_h, axis=-1, keepdims=True)                # (S*TB, 1) lane reduce
    score = score.reshape(S, TB, 1) + sv_ref[...]                     # + per-example aspect term

    # softmax over the sentence dimension (leading slab axis -> VPU maxes/adds)
    m = jnp.max(score, axis=0, keepdims=True)
    e = jnp.exp(score - m)
    denom = jnp.sum(e, axis=0, keepdims=True)
    alpha = e * pl.reciprocal(denom, approx=True)                     # (S, TB, 1)

    # ---- context r[b] = sum_t alpha[t,b] * H[t,b,:]  (broadcast-mul + slab adds) ----
    r = jnp.sum(alpha * hs2.reshape(S, TB, H), axis=0)                # (TB, H)

    # ---- fused final projection: [r | h_n] @ [Wf ; Ws] ----
    rh = jnp.concatenate([r, h_n], axis=-1).astype(jnp.bfloat16)      # (TB, 2H)
    h_ast = jnp.tanh(jnp.dot(rh, wfs_ref[...],
                             preferred_element_type=jnp.float32) + bfs)
    y = jnp.dot(h_ast.astype(jnp.bfloat16), wc_ref[...],
                preferred_element_type=jnp.float32) + bc              # (TB, P)

    # ---- single lane-dense output slab: [logits | alpha | zero pad] ----
    alpha_bt = jnp.concatenate([alpha[t] for t in range(S)], axis=-1)  # (TB, S)
    pieces = [y, alpha_bt]
    if OW > P + S:
        pieces.append(jnp.zeros((TB, OW - P - S), jnp.float32))
    out_ref[...] = jnp.concatenate(pieces, axis=-1)


def build_at_call(B_pad, TB, S, E, H, P, BW, OW):
    grid = (B_pad // TB,)

    def shared(shape):
        nd = len(shape)
        return pl.BlockSpec(shape, lambda b, _nd=nd: (0,) * _nd)

    in_specs = [
        pl.BlockSpec((S, TB, E), lambda b: (0, b, 0)),   # x (time-major, batch-tiled)
        pl.BlockSpec((TB, 1), lambda b: (b, 0)),         # sv (aspect score term)
        shared((E, 4 * H)),      # wih_T   bf16
        shared((H, 4 * H)),      # whh_T   bf16
        shared((H, H)),          # w1_T    bf16
        shared((2 * H, H)),      # wfs_T   bf16
        shared((H, P)),          # wc_T    bf16
        shared((8, BW)),         # packed biases / rows, f32
    ]
    out_specs = pl.BlockSpec((TB, OW), lambda b: (b, 0))
    out_shape = jax.ShapeDtypeStruct((B_pad, OW), jnp.float32)
    return pl.pallas_call(
        at_kernel,
        out_shape=out_shape,
        grid_spec=pltpu.PrefetchScalarGridSpec(
            num_scalar_prefetch=0,
            grid=grid,
            in_specs=in_specs,
            out_specs=out_specs,
            scratch_shapes=[pltpu.VMEM((S * TB, 4 * H), jnp.float32),
                            pltpu.VMEM((S * TB, H), jnp.float32)],
        ),
        compiler_params=pltpu.CompilerParams(
            dimension_semantics=("parallel",)),
    )


def init_params(key, vocab, E, H, A, P):
    AE = A * E
    ks = jax.random.split(key, 16)

    def rnd(k, shape, scale=0.1):
        return (scale * jax.random.normal(k, shape)).astype(jnp.float32)

    wa_T = rnd(ks[8], (H + AE, 1))
    return dict(
        embedding=rnd(ks[0], (vocab, E), 1.0),
        wih_T=rnd(ks[1], (E, 4 * H)),
        whh_T=rnd(ks[2], (H, 4 * H)),
        b_lstm=rnd(ks[3], (1, 4 * H)),
        w1_T=rnd(ks[4], (H, H)), b1=rnd(ks[5], (1, H)),
        w2_T=rnd(ks[6], (AE, AE)), b2=rnd(ks[7], (1, AE)),
        wa_h=wa_T[:H], wa_v=wa_T[H:], ba=rnd(ks[9], (1, 1)),
        wf_T=rnd(ks[10], (H, H)), bf=rnd(ks[11], (1, H)),
        ws_T=rnd(ks[12], (H, H)), bs=rnd(ks[13], (1, H)),
        wc_T=rnd(ks[14], (H, P)), bc=rnd(ks[15], (1, P)),
    )


def at_forward(sentences, aspects, p):
    """Full forward: embedding glue + aspect branch in XLA + Pallas kernel."""
    emb = p["embedding"]
    B, S = sentences.shape
    A = aspects.shape[1]
    E = emb.shape[1]
    H = p["whh_T"].shape[0]
    P = p["wc_T"].shape[1]
    AE = A * E

    x = emb[sentences].astype(jnp.float32)                  # (B, S, E) gather (glue)
    asp = emb[aspects].reshape(B, AE).astype(jnp.float32)   # (B, AE) JoinRepeatWords (rows identical)

    # Aspect branch hoisted out of the kernel: per example it is a constant
    # added to every timestep's pre-softmax score.
    sv = jnp.tanh(asp @ p["w2_T"] + p["b2"]) @ p["wa_v"] + p["ba"]   # (B, 1)

    # ---- batch tiling: large TB, but >= 2 grid steps when possible (v7x) ----
    B_pad = _round_up(B, 8)
    TB_CAP = 256
    if B_pad <= 8:
        TB = B_pad
    elif B_pad <= 2 * TB_CAP:
        TB = _round_up((B_pad + 1) // 2, 8)   # exactly 2 parallel grid steps
    else:
        TB = TB_CAP
    B_pad = _round_up(B_pad, TB)
    if B_pad != B:
        x = jnp.pad(x, ((0, B_pad - B), (0, 0), (0, 0)))
        sv = jnp.pad(sv, ((0, B_pad - B), (0, 0)))
    x_t = jnp.transpose(x, (1, 0, 2))                        # (S, B_pad, E) time-major

    # ---- bf16 MXU operands (f32 accumulation inside the kernel) ----
    bf16 = jnp.bfloat16
    wih = p["wih_T"].astype(bf16)
    whh = p["whh_T"].astype(bf16)
    w1 = p["w1_T"].astype(bf16)
    wfs = jnp.concatenate([p["wf_T"], p["ws_T"]], axis=0).astype(bf16)   # (2H, H)
    wc = p["wc_T"].astype(bf16)

    # ---- pack all tiny f32 row operands into one (8, BW) block ----
    BW = max(_round_up(4 * H, 128), 128)
    brow = jnp.zeros((8, BW), jnp.float32)
    brow = brow.at[0, :4 * H].set(p["b_lstm"][0])
    brow = brow.at[1, :H].set(p["b1"][0])
    brow = brow.at[2, :H].set(p["wa_h"][:, 0])
    brow = brow.at[3, :H].set(p["bf"][0] + p["bs"][0])
    brow = brow.at[4, :P].set(p["bc"][0])

    OW = _round_up(P + S, 128)   # lane-dense output slab width

    call = build_at_call(B_pad, TB, S, E, H, P, BW, OW)
    out = call(x_t, sv, wih, whh, w1, wfs, wc, brow)

    y = jnp.squeeze(out[:B, :P])              # mirrors torch .squeeze()
    alpha = out[:B, P:P + S].reshape(B, 1, S)  # (B, 1, S) as in the PyTorch module
    return y, alpha


def at_reference(sentences, aspects, p):
    """Pure-JAX f32 reference mirroring the PyTorch forward, for verification."""
    emb = p["embedding"]
    x = emb[sentences]
    B, S, E = x.shape
    A = aspects.shape[1]
    AE = A * E
    asp = emb[aspects].reshape(B, 1, AE)
    H = p["whh_T"].shape[0]

    def cell(carry, x_t):
        h, c = carry
        g = x_t @ p["wih_T"] + h @ p["whh_T"] + p["b_lstm"][0]
        i = jax.nn.sigmoid(g[:, :H]); f = jax.nn.sigmoid(g[:, H:2 * H])
        gg = jnp.tanh(g[:, 2 * H:3 * H]); o = jax.nn.sigmoid(g[:, 3 * H:])
        c = f * c + i * gg
        h = o * jnp.tanh(c)
        return (h, c), h

    h0 = jnp.zeros((B, H), jnp.float32)
    (h_n, _), Hs = lax.scan(cell, (h0, h0), jnp.swapaxes(x, 0, 1))
    Hs = jnp.swapaxes(Hs, 0, 1)                                   # (B, S, H)
    WH = Hs @ p["w1_T"] + p["b1"][0]
    WVa = jnp.broadcast_to(asp @ p["w2_T"] + p["b2"][0], (B, S, AE))
    M = jnp.tanh(jnp.concatenate([WH, WVa], axis=2))
    wa = jnp.concatenate([p["wa_h"], p["wa_v"]], axis=0)
    alpha = jnp.swapaxes(M @ wa + p["ba"][0], 1, 2)               # (B, 1, S)
    alpha = jax.nn.softmax(alpha, axis=2)
    r = alpha @ Hs                                                # (B, 1, H)
    Wr = r @ p["wf_T"] + p["bf"][0]
    Whn = h_n[:, None, :] @ p["ws_T"] + p["bs"][0]
    h_ast = jnp.tanh(Wr + Whn)
    y = jnp.squeeze(h_ast @ p["wc_T"] + p["bc"][0])
    return y, alpha


if __name__ == "__main__":
    # small shapes consistent with the module
    VOCAB, E, H, P = 50, 32, 32, 3
    B, S, A = 2, 8, 4          # batch, max_sentence_len, max_aspect_len

    key = jax.random.PRNGKey(0)
    kp, ks, ka = jax.random.split(key, 3)
    params = init_params(kp, VOCAB, E, H, A, P)
    sentences = jax.random.randint(ks, (B, S), 0, VOCAB, dtype=jnp.int32)
    aspects = jax.random.randint(ka, (B, A), 0, VOCAB, dtype=jnp.int32)

    y, alpha = at_forward(sentences, aspects, params)
    jax.block_until_ready((y, alpha))

    y_ref, alpha_ref = at_reference(sentences, aspects, params)
    assert y.shape == (B, P) and alpha.shape == (B, 1, S)
    assert jnp.allclose(y, y_ref, rtol=2e-2, atol=2e-2)
    assert jnp.allclose(alpha, alpha_ref, rtol=2e-2, atol=2e-2)

    print("KERNEL_OK")
</pallas_src>

<mosaic_0001>
module attributes {stable_mosaic.version = 11 : i64} {
  func.func @at_kernel(%arg0: i32, %arg1: memref<8x8x32xf32, #tpu.memory_space<vmem>>, %arg2: memref<8x1xf32, #tpu.memory_space<vmem>>, %arg3: memref<32x128xbf16, #tpu.memory_space<vmem>>, %arg4: memref<32x128xbf16, #tpu.memory_space<vmem>>, %arg5: memref<32x32xbf16, #tpu.memory_space<vmem>>, %arg6: memref<64x32xbf16, #tpu.memory_space<vmem>>, %arg7: memref<32x3xbf16, #tpu.memory_space<vmem>>, %arg8: memref<8x128xf32, #tpu.memory_space<vmem>>, %arg9: memref<8x128xf32, #tpu.memory_space<vmem>>, %arg10: memref<64x128xf32, #tpu.memory_space<vmem>>, %arg11: memref<64x32xf32, #tpu.memory_space<vmem>>) attributes {dimension_semantics = [#tpu.dimension_semantics<parallel>], iteration_bounds = array<i64: 1>, scalar_prefetch = 0 : i64, scratch_operands = 2 : i64, tpu.core_type = #tpu.core_type<tc>, window_params = [{transform_indices = @transform_0, window_bounds = array<i64: 8, 8, 32>}, {transform_indices = @transform_1, window_bounds = array<i64: 8, 1>}, {pipeline_mode = #tpu.pipeline_mode<synchronous>, transform_indices = @transform_2, window_bounds = array<i64: 32, 128>}, {pipeline_mode = #tpu.pipeline_mode<synchronous>, transform_indices = @transform_3, window_bounds = array<i64: 32, 128>}, {pipeline_mode = #tpu.pipeline_mode<synchronous>, transform_indices = @transform_4, window_bounds = array<i64: 32, 32>}, {pipeline_mode = #tpu.pipeline_mode<synchronous>, transform_indices = @transform_5, window_bounds = array<i64: 64, 32>}, {pipeline_mode = #tpu.pipeline_mode<synchronous>, transform_indices = @transform_6, window_bounds = array<i64: 32, 3>}, {pipeline_mode = #tpu.pipeline_mode<synchronous>, transform_indices = @transform_7, window_bounds = array<i64: 8, 128>}, {transform_indices = @transform_8, window_bounds = array<i64: 8, 128>}]} {
    %c0 = arith.constant 0 : index
    %c0_0 = arith.constant 0 : index
    %0 = vector.load %arg8[%c0, %c0_0] : memref<8x128xf32, #tpu.memory_space<vmem>>, vector<1x128xf32>
    %c1 = arith.constant 1 : index
    %c0_1 = arith.constant 0 : index
    %1 = vector.load %arg8[%c1, %c0_1] : memref<8x128xf32, #tpu.memory_space<vmem>>, vector<1x32xf32>
    %c2 = arith.constant 2 : index
    %c0_2 = arith.constant 0 : index
    %2 = vector.load %arg8[%c2, %c0_2] : memref<8x128xf32, #tpu.memory_space<vmem>>, vector<1x32xf32>
    %c3 = arith.constant 3 : index
    %c0_3 = arith.constant 0 : index
    %3 = vector.load %arg8[%c3, %c0_3] : memref<8x128xf32, #tpu.memory_space<vmem>>, vector<1x32xf32>
    %c4 = arith.constant 4 : index
    %c0_4 = arith.constant 0 : index
    %4 = vector.load %arg8[%c4, %c0_4] : memref<8x128xf32, #tpu.memory_space<vmem>>, vector<1x3xf32>
    %c0_5 = arith.constant 0 : index
    %c0_6 = arith.constant 0 : index
    %c0_7 = arith.constant 0 : index
    %5 = vector.load %arg1[%c0_5, %c0_6, %c0_7] : memref<8x8x32xf32, #tpu.memory_space<vmem>>, vector<8x8x32xf32>
    %6 = vector.shape_cast %5 : vector<8x8x32xf32> to vector<64x32xf32>
    %7 = arith.truncf %6 : vector<64x32xf32> to vector<64x32xbf16>
    %c0_8 = arith.constant 0 : index
    %c0_9 = arith.constant 0 : index
    %8 = vector.load %arg3[%c0_8, %c0_9] : memref<32x128xbf16, #tpu.memory_space<vmem>>, vector<32x128xbf16>
    %cst = arith.constant dense<0.000000e+00> : vector<64x128xf32>
    %9 = tpu.matmul %7, %8, %cst {dimension_numbers = #tpu.dot_dimension_numbers<[1], [0], [0], [1], [0, 0, 1, 1], [], []>} : vector<64x32xbf16>, vector<32x128xbf16>, vector<64x128xf32> -> vector<64x128xf32>
    %10 = vector.broadcast %0 : vector<1x128xf32> to vector<64x128xf32>
    %11 = arith.addf %9, %10 : vector<64x128xf32>
    %c0_10 = arith.constant 0 : index
    %c0_11 = arith.constant 0 : index
    %12 = vector.load %arg10[%c0_10, %c0_11] : memref<64x128xf32, #tpu.memory_space<vmem>>, vector<64x128xf32>
    tpu.vector_store %arg10[%c0_10, %c0_11], %11 {strides = array<i32>} : memref<64x128xf32, #tpu.memory_space<vmem>>, vector<64x128xf32>,
    %c0_12 = arith.constant 0 : index
    %c0_13 = arith.constant 0 : index
    %13 = vector.load %arg4[%c0_12, %c0_13] : memref<32x128xbf16, #tpu.memory_space<vmem>>, vector<32x128xbf16>
    %cst_14 = arith.constant 0.000000e+00 : f32
    %14 = vector.broadcast %cst_14 : f32 to vector<8x32xf32>
    %cst_15 = arith.constant 0.000000e+00 : f32
    %15 = vector.broadcast %cst_15 : f32 to vector<8x32xf32>
    %c0_16 = arith.constant 0 : index
    %c0_17 = arith.constant 0 : index
    %16 = vector.load %arg10[%c0_16, %c0_17] : memref<64x128xf32, #tpu.memory_space<vmem>>, vector<8x128xf32>
    %17 = arith.truncf %14 : vector<8x32xf32> to vector<8x32xbf16>
    %cst_18 = arith.constant dense<0.000000e+00> : vector<8x128xf32>
    %18 = tpu.matmul %17, %13, %cst_18 {dimension_numbers = #tpu.dot_dimension_numbers<[1], [0], [0], [1], [0, 0, 1, 1], [], []>} : vector<8x32xbf16>, vector<32x128xbf16>, vector<8x128xf32> -> vector<8x128xf32>
    %19 = arith.addf %16, %18 : vector<8x128xf32>
    %20 = arith.negf %19 : vector<8x128xf32>
    %21 = math.exp %20 : vector<8x128xf32>
    %cst_19 = arith.constant 1.000000e+00 : f32
    %22 = vector.broadcast %cst_19 : f32 to vector<8x128xf32>
    %23 = arith.addf %22, %21 : vector<8x128xf32>
    %24 = arith.divf %22, %23 : vector<8x128xf32>
    %25 = math.tanh %19 : vector<8x128xf32>
    %26 = vector.extract_strided_slice %24 {offsets = [0, 0], sizes = [8, 32], strides = [1, 1]} : vector<8x128xf32> to vector<8x32xf32>
    %27 = vector.extract_strided_slice %24 {offsets = [0, 32], sizes = [8, 32], strides = [1, 1]} : vector<8x128xf32> to vector<8x32xf32>
    %28 = vector.extract_strided_slice %24 {offsets = [0, 96], sizes = [8, 32], strides = [1, 1]} : vector<8x128xf32> to vector<8x32xf32>
    %29 = vector.extract_strided_slice %25 {offsets = [0, 64], sizes = [8, 32], strides = [1, 1]} : vector<8x128xf32> to vector<8x32xf32>
    %30 = arith.mulf %27, %15 : vector<8x32xf32>
    %31 = arith.mulf %26, %29 : vector<8x32xf32>
    %32 = arith.addf %30, %31 : vector<8x32xf32>
    %33 = math.tanh %32 : vector<8x32xf32>
    %34 = arith.mulf %28, %33 : vector<8x32xf32>
    %c0_20 = arith.constant 0 : index
    %c0_21 = arith.constant 0 : index
    %35 = vector.load %arg11[%c0_20, %c0_21] : memref<64x32xf32, #tpu.memory_space<vmem>>, vector<8x32xf32>
    tpu.vector_store %arg11[%c0_20, %c0_21], %34 {strides = array<i32>} : memref<64x32xf32, #tpu.memory_space<vmem>>, vector<8x32xf32>,
    %c8 = arith.constant 8 : index
    %c0_22 = arith.constant 0 : index
    %36 = vector.load %arg10[%c8, %c0_22] : memref<64x128xf32, #tpu.memory_space<vmem>>, vector<8x128xf32>
    %37 = arith.truncf %34 : vector<8x32xf32> to vector<8x32xbf16>
    %cst_23 = arith.constant dense<0.000000e+00> : vector<8x128xf32>
    %38 = tpu.matmul %37, %13, %cst_23 {dimension_numbers = #tpu.dot_dimension_numbers<[1], [0], [0], [1], [0, 0, 1, 1], [], []>} : vector<8x32xbf16>, vector<32x128xbf16>, vector<8x128xf32> -> vector<8x128xf32>
    %39 = arith.addf %36, %38 : vector<8x128xf32>
    %40 = arith.negf %39 : vector<8x128xf32>
    %41 = math.exp %40 : vector<8x128xf32>
    %cst_24 = arith.constant 1.000000e+00 : f32
    %42 = vector.broadcast %cst_24 : f32 to vector<8x128xf32>
    %43 = arith.addf %42, %41 : vector<8x128xf32>
    %44 = arith.divf %42, %43 : vector<8x128xf32>
    %45 = math.tanh %39 : vector<8x128xf32>
    %46 = vector.extract_strided_slice %44 {offsets = [0, 0], sizes = [8, 32], strides = [1, 1]} : vector<8x128xf32> to vector<8x32xf32>
    %47 = vector.extract_strided_slice %44 {offsets = [0, 32], sizes = [8, 32], strides = [1, 1]} : vector<8x128xf32> to vector<8x32xf32>
    %48 = vector.extract_strided_slice %44 {offsets = [0, 96], sizes = [8, 32], strides = [1, 1]} : vector<8x128xf32> to vector<8x32xf32>
    %49 = vector.extract_strided_slice %45 {offsets = [0, 64], sizes = [8, 32], strides = [1, 1]} : vector<8x128xf32> to vector<8x32xf32>
    %50 = arith.mulf %47, %32 : vector<8x32xf32>
    %51 = arith.mulf %46, %49 : vector<8x32xf32>
    %52 = arith.addf %50, %51 : vector<8x32xf32>
    %53 = math.tanh %52 : vector<8x32xf32>
    %54 = arith.mulf %48, %53 : vector<8x32xf32>
    %c8_25 = arith.constant 8 : index
    %c0_26 = arith.constant 0 : index
    %55 = vector.load %arg11[%c8_25, %c0_26] : memref<64x32xf32, #tpu.memory_space<vmem>>, vector<8x32xf32>
    tpu.vector_store %arg11[%c8_25, %c0_26], %54 {strides = array<i32>} : memref<64x32xf32, #tpu.memory_space<vmem>>, vector<8x32xf32>,
    %c16 = arith.constant 16 : index
    %c0_27 = arith.constant 0 : index
    %56 = vector.load %arg10[%c16, %c0_27] : memref<64x128xf32, #tpu.memory_space<vmem>>, vector<8x128xf32>
    %57 = arith.truncf %54 : vector<8x32xf32> to vector<8x32xbf16>
    %cst_28 = arith.constant dense<0.000000e+00> : vector<8x128xf32>
    %58 = tpu.matmul %57, %13, %cst_28 {dimension_numbers = #tpu.dot_dimension_numbers<[1], [0], [0], [1], [0, 0, 1, 1], [], []>} : vector<8x32xbf16>, vector<32x128xbf16>, vector<8x128xf32> -> vector<8x128xf32>
    %59 = arith.addf %56, %58 : vector<8x128xf32>
    %60 = arith.negf %59 : vector<8x128xf32>
    %61 = math.exp %60 : vector<8x128xf32>
    %cst_29 = arith.constant 1.000000e+00 : f32
    %62 = vector.broadcast %cst_29 : f32 to vector<8x128xf32>
    %63 = arith.addf %62, %61 : vector<8x128xf32>
    %64 = arith.divf %62, %63 : vector<8x128xf32>
    %65 = math.tanh %59 : vector<8x128xf32>
    %66 = vector.extract_strided_slice %64 {offsets = [0, 0], sizes = [8, 32], strides = [1, 1]} : vector<8x128xf32> to vector<8x32xf32>
    %67 = vector.extract_strided_slice %64 {offsets = [0, 32], sizes = [8, 32], strides = [1, 1]} : vector<8x128xf32> to vector<8x32xf32>
    %68 = vector.extract_strided_slice %64 {offsets = [0, 96], sizes = [8, 32], strides = [1, 1]} : vector<8x128xf32> to vector<8x32xf32>
    %69 = vector.extract_strided_slice %65 {offsets = [0, 64], sizes = [8, 32], strides = [1, 1]} : vector<8x128xf32> to vector<8x32xf32>
    %70 = arith.mulf %67, %52 : vector<8x32xf32>
    %71 = arith.mulf %66, %69 : vector<8x32xf32>
    %72 = arith.addf %70, %71 : vector<8x32xf32>
    %73 = math.tanh %72 : vector<8x32xf32>
    %74 = arith.mulf %68, %73 : vector<8x32xf32>
    %c16_30 = arith.constant 16 : index
    %c0_31 = arith.constant 0 : index
    %75 = vector.load %arg11[%c16_30, %c0_31] : memref<64x32xf32, #tpu.memory_space<vmem>>, vector<8x32xf32>
    tpu.vector_store %arg11[%c16_30, %c0_31], %74 {strides = array<i32>} : memref<64x32xf32, #tpu.memory_space<vmem>>, vector<8x32xf32>,
    %c24 = arith.constant 24 : index
    %c0_32 = arith.constant 0 : index
    %76 = vector.load %arg10[%c24, %c0_32] : memref<64x128xf32, #tpu.memory_space<vmem>>, vector<8x128xf32>
    %77 = arith.truncf %74 : vector<8x32xf32> to vector<8x32xbf16>
    %cst_33 = arith.constant dense<0.000000e+00> : vector<8x128xf32>
    %78 = tpu.matmul %77, %13, %cst_33 {dimension_numbers = #tpu.dot_dimension_numbers<[1], [0], [0], [1], [0, 0, 1, 1], [], []>} : vector<8x32xbf16>, vector<32x128xbf16>, vector<8x128xf32> -> vector<8x128xf32>
    %79 = arith.addf %76, %78 : vector<8x128xf32>
    %80 = arith.negf %79 : vector<8x128xf32>
    %81 = math.exp %80 : vector<8x128xf32>
    %cst_34 = arith.constant 1.000000e+00 : f32
    %82 = vector.broadcast %cst_34 : f32 to vector<8x128xf32>
    %83 = arith.addf %82, %81 : vector<8x128xf32>
    %84 = arith.divf %82, %83 : vector<8x128xf32>
    %85 = math.tanh %79 : vector<8x128xf32>
    %86 = vector.extract_strided_slice %84 {offsets = [0, 0], sizes = [8, 32], strides = [1, 1]} : vector<8x128xf32> to vector<8x32xf32>
    %87 = vector.extract_strided_slice %84 {offsets = [0, 32], sizes = [8, 32], strides = [1, 1]} : vector<8x128xf32> to vector<8x32xf32>
    %88 = vector.extract_strided_slice %84 {offsets = [0, 96], sizes = [8, 32], strides = [1, 1]} : vector<8x128xf32> to vector<8x32xf32>
    %89 = vector.extract_strided_slice %85 {offsets = [0, 64], sizes = [8, 32], strides = [1, 1]} : vector<8x128xf32> to vector<8x32xf32>
    %90 = arith.mulf %87, %72 : vector<8x32xf32>
    %91 = arith.mulf %86, %89 : vector<8x32xf32>
    %92 = arith.addf %90, %91 : vector<8x32xf32>
    %93 = math.tanh %92 : vector<8x32xf32>
    %94 = arith.mulf %88, %93 : vector<8x32xf32>
    %c24_35 = arith.constant 24 : index
    %c0_36 = arith.constant 0 : index
    %95 = vector.load %arg11[%c24_35, %c0_36] : memref<64x32xf32, #tpu.memory_space<vmem>>, vector<8x32xf32>
    tpu.vector_store %arg11[%c24_35, %c0_36], %94 {strides = array<i32>} : memref<64x32xf32, #tpu.memory_space<vmem>>, vector<8x32xf32>,
    %c32 = arith.constant 32 : index
    %c0_37 = arith.constant 0 : index
    %96 = vector.load %arg10[%c32, %c0_37] : memref<64x128xf32, #tpu.memory_space<vmem>>, vector<8x128xf32>
    %97 = arith.truncf %94 : vector<8x32xf32> to vector<8x32xbf16>
    %cst_38 = arith.constant dense<0.000000e+00> : vector<8x128xf32>
    %98 = tpu.matmul %97, %13, %cst_38 {dimension_numbers = #tpu.dot_dimension_numbers<[1], [0], [0], [1], [0, 0, 1, 1], [], []>} : vector<8x32xbf16>, vector<32x128xbf16>, vector<8x128xf32> -> vector<8x128xf32>
    %99 = arith.addf %96, %98 : vector<8x128xf32>
    %100 = arith.negf %99 : vector<8x128xf32>
    %101 = math.exp %100 : vector<8x128xf32>
    %cst_39 = arith.constant 1.000000e+00 : f32
    %102 = vector.broadcast %cst_39 : f32 to vector<8x128xf32>
    %103 = arith.addf %102, %101 : vector<8x128xf32>
    %104 = arith.divf %102, %103 : vector<8x128xf32>
    %105 = math.tanh %99 : vector<8x128xf32>
    %106 = vector.extract_strided_slice %104 {offsets = [0, 0], sizes = [8, 32], strides = [1, 1]} : vector<8x128xf32> to vector<8x32xf32>
    %107 = vector.extract_strided_slice %104 {offsets = [0, 32], sizes = [8, 32], strides = [1, 1]} : vector<8x128xf32> to vector<8x32xf32>
    %108 = vector.extract_strided_slice %104 {offsets = [0, 96], sizes = [8, 32], strides = [1, 1]} : vector<8x128xf32> to vector<8x32xf32>
    %109 = vector.extract_strided_slice %105 {offsets = [0, 64], sizes = [8, 32], strides = [1, 1]} : vector<8x128xf32> to vector<8x32xf32>
    %110 = arith.mulf %107, %92 : vector<8x32xf32>
    %111 = arith.mulf %106, %109 : vector<8x32xf32>
    %112 = arith.addf %110, %111 : vector<8x32xf32>
    %113 = math.tanh %112 : vector<8x32xf32>
    %114 = arith.mulf %108, %113 : vector<8x32xf32>
    %c32_40 = arith.constant 32 : index
    %c0_41 = arith.constant 0 : index
    %115 = vector.load %arg11[%c32_40, %c0_41] : memref<64x32xf32, #tpu.memory_space<vmem>>, vector<8x32xf32>
    tpu.vector_store %arg11[%c32_40, %c0_41], %114 {strides = array<i32>} : memref<64x32xf32, #tpu.memory_space<vmem>>, vector<8x32xf32>,
    %c40 = arith.constant 40 : index
    %c0_42 = arith.constant 0 : index
    %116 = vector.load %arg10[%c40, %c0_42] : memref<64x128xf32, #tpu.memory_space<vmem>>, vector<8x128xf32>
    %117 = arith.truncf %114 : vector<8x32xf32> to vector<8x32xbf16>
    %cst_43 = arith.constant dense<0.000000e+00> : vector<8x128xf32>
    %118 = tpu.matmul %117, %13, %cst_43 {dimension_numbers = #tpu.dot_dimension_numbers<[1], [0], [0], [1], [0, 0, 1, 1], [], []>} : vector<8x32xbf16>, vector<32x128xbf16>, vector<8x128xf32> -> vector<8x128xf32>
    %119 = arith.addf %116, %118 : vector<8x128xf32>
    %120 = arith.negf %119 : vector<8x128xf32>
    %121 = math.exp %120 : vector<8x128xf32>
    %cst_44 = arith.constant 1.000000e+00 : f32
    %122 = vector.broadcast %cst_44 : f32 to vector<8x128xf32>
    %123 = arith.addf %122, %121 : vector<8x128xf32>
    %124 = arith.divf %122, %123 : vector<8x128xf32>
    %125 = math.tanh %119 : vector<8x128xf32>
    %126 = vector.extract_strided_slice %124 {offsets = [0, 0], sizes = [8, 32], strides = [1, 1]} : vector<8x128xf32> to vector<8x32xf32>
    %127 = vector.extract_strided_slice %124 {offsets = [0, 32], sizes = [8, 32], strides = [1, 1]} : vector<8x128xf32> to vector<8x32xf32>
    %128 = vector.extract_strided_slice %124 {offsets = [0, 96], sizes = [8, 32], strides = [1, 1]} : vector<8x128xf32> to vector<8x32xf32>
    %129 = vector.extract_strided_slice %125 {offsets = [0, 64], sizes = [8, 32], strides = [1, 1]} : vector<8x128xf32> to vector<8x32xf32>
    %130 = arith.mulf %127, %112 : vector<8x32xf32>
    %131 = arith.mulf %126, %129 : vector<8x32xf32>
    %132 = arith.addf %130, %131 : vector<8x32xf32>
    %133 = math.tanh %132 : vector<8x32xf32>
    %134 = arith.mulf %128, %133 : vector<8x32xf32>
    %c40_45 = arith.constant 40 : index
    %c0_46 = arith.constant 0 : index
    %135 = vector.load %arg11[%c40_45, %c0_46] : memref<64x32xf32, #tpu.memory_space<vmem>>, vector<8x32xf32>
    tpu.vector_store %arg11[%c40_45, %c0_46], %134 {strides = array<i32>} : memref<64x32xf32, #tpu.memory_space<vmem>>, vector<8x32xf32>,
    %c48 = arith.constant 48 : index
    %c0_47 = arith.constant 0 : index
    %136 = vector.load %arg10[%c48, %c0_47] : memref<64x128xf32, #tpu.memory_space<vmem>>, vector<8x128xf32>
    %137 = arith.truncf %134 : vector<8x32xf32> to vector<8x32xbf16>
    %cst_48 = arith.constant dense<0.000000e+00> : vector<8x128xf32>
    %138 = tpu.matmul %137, %13, %cst_48 {dimension_numbers = #tpu.dot_dimension_numbers<[1], [0], [0], [1], [0, 0, 1, 1], [], []>} : vector<8x32xbf16>, vector<32x128xbf16>, vector<8x128xf32> -> vector<8x128xf32>
    %139 = arith.addf %136, %138 : vector<8x128xf32>
    %140 = arith.negf %139 : vector<8x128xf32>
    %141 = math.exp %140 : vector<8x128xf32>
    %cst_49 = arith.constant 1.000000e+00 : f32
    %142 = vector.broadcast %cst_49 : f32 to vector<8x128xf32>
    %143 = arith.addf %142, %141 : vector<8x128xf32>
    %144 = arith.divf %142, %143 : vector<8x128xf32>
    %145 = math.tanh %139 : vector<8x128xf32>
    %146 = vector.extract_strided_slice %144 {offsets = [0, 0], sizes = [8, 32], strides = [1, 1]} : vector<8x128xf32> to vector<8x32xf32>
    %147 = vector.extract_strided_slice %144 {offsets = [0, 32], sizes = [8, 32], strides = [1, 1]} : vector<8x128xf32> to vector<8x32xf32>
    %148 = vector.extract_strided_slice %144 {offsets = [0, 96], sizes = [8, 32], strides = [1, 1]} : vector<8x128xf32> to vector<8x32xf32>
    %149 = vector.extract_strided_slice %145 {offsets = [0, 64], sizes = [8, 32], strides = [1, 1]} : vector<8x128xf32> to vector<8x32xf32>
    %150 = arith.mulf %147, %132 : vector<8x32xf32>
    %151 = arith.mulf %146, %149 : vector<8x32xf32>
    %152 = arith.addf %150, %151 : vector<8x32xf32>
    %153 = math.tanh %152 : vector<8x32xf32>
    %154 = arith.mulf %148, %153 : vector<8x32xf32>
    %c48_50 = arith.constant 48 : index
    %c0_51 = arith.constant 0 : index
    %155 = vector.load %arg11[%c48_50, %c0_51] : memref<64x32xf32, #tpu.memory_space<vmem>>, vector<8x32xf32>
    tpu.vector_store %arg11[%c48_50, %c0_51], %154 {strides = array<i32>} : memref<64x32xf32, #tpu.memory_space<vmem>>, vector<8x32xf32>,
    %c56 = arith.constant 56 : index
    %c0_52 = arith.constant 0 : index
    %156 = vector.load %arg10[%c56, %c0_52] : memref<64x128xf32, #tpu.memory_space<vmem>>, vector<8x128xf32>
    %157 = arith.truncf %154 : vector<8x32xf32> to vector<8x32xbf16>
    %cst_53 = arith.constant dense<0.000000e+00> : vector<8x128xf32>
    %158 = tpu.matmul %157, %13, %cst_53 {dimension_numbers = #tpu.dot_dimension_numbers<[1], [0], [0], [1], [0, 0, 1, 1], [], []>} : vector<8x32xbf16>, vector<32x128xbf16>, vector<8x128xf32> -> vector<8x128xf32>
    %159 = arith.addf %156, %158 : vector<8x128xf32>
    %160 = arith.negf %159 : vector<8x128xf32>
    %161 = math.exp %160 : vector<8x128xf32>
    %cst_54 = arith.constant 1.000000e+00 : f32
    %162 = vector.broadcast %cst_54 : f32 to vector<8x128xf32>
    %163 = arith.addf %162, %161 : vector<8x128xf32>
    %164 = arith.divf %162, %163 : vector<8x128xf32>
    %165 = math.tanh %159 : vector<8x128xf32>
    %166 = vector.extract_strided_slice %164 {offsets = [0, 0], sizes = [8, 32], strides = [1, 1]} : vector<8x128xf32> to vector<8x32xf32>
    %167 = vector.extract_strided_slice %164 {offsets = [0, 32], sizes = [8, 32], strides = [1, 1]} : vector<8x128xf32> to vector<8x32xf32>
    %168 = vector.extract_strided_slice %164 {offsets = [0, 96], sizes = [8, 32], strides = [1, 1]} : vector<8x128xf32> to vector<8x32xf32>
    %169 = vector.extract_strided_slice %165 {offsets = [0, 64], sizes = [8, 32], strides = [1, 1]} : vector<8x128xf32> to vector<8x32xf32>
    %170 = arith.mulf %167, %152 : vector<8x32xf32>
    %171 = arith.mulf %166, %169 : vector<8x32xf32>
    %172 = arith.addf %170, %171 : vector<8x32xf32>
    %173 = math.tanh %172 : vector<8x32xf32>
    %174 = arith.mulf %168, %173 : vector<8x32xf32>
    %c56_55 = arith.constant 56 : index
    %c0_56 = arith.constant 0 : index
    %175 = vector.load %arg11[%c56_55, %c0_56] : memref<64x32xf32, #tpu.memory_space<vmem>>, vector<8x32xf32>
    tpu.vector_store %arg11[%c56_55, %c0_56], %174 {strides = array<i32>} : memref<64x32xf32, #tpu.memory_space<vmem>>, vector<8x32xf32>,
    %c0_57 = arith.constant 0 : index
    %c0_58 = arith.constant 0 : index
    %176 = vector.load %arg11[%c0_57, %c0_58] : memref<64x32xf32, #tpu.memory_space<vmem>>, vector<64x32xf32>
    %177 = arith.truncf %176 : vector<64x32xf32> to vector<64x32xbf16>
    %c0_59 = arith.constant 0 : index
    %c0_60 = arith.constant 0 : index
    %178 = vector.load %arg5[%c0_59, %c0_60] : memref<32x32xbf16, #tpu.memory_space<vmem>>, vector<32x32xbf16>
    %cst_61 = arith.constant dense<0.000000e+00> : vector<64x32xf32>
    %179 = tpu.matmul %177, %178, %cst_61 {dimension_numbers = #tpu.dot_dimension_numbers<[1], [0], [0], [1], [0, 0, 1, 1], [], []>} : vector<64x32xbf16>, vector<32x32xbf16>, vector<64x32xf32> -> vector<64x32xf32>
    %180 = vector.broadcast %1 : vector<1x32xf32> to vector<64x32xf32>
    %181 = arith.addf %179, %180 : vector<64x32xf32>
    %182 = math.tanh %181 : vector<64x32xf32>
    %183 = vector.broadcast %2 : vector<1x32xf32> to vector<64x32xf32>
    %184 = arith.mulf %182, %183 : vector<64x32xf32>
    %cst_62 = arith.constant dense<0.000000e+00> : vector<64xf32>
    %185 = vector.multi_reduction <add>, %184, %cst_62 [1] : vector<64x32xf32> to vector<64xf32>
    %186 = vector.shape_cast %185 : vector<64xf32> to vector<64x1xf32>
    %187 = vector.shape_cast %186 : vector<64x1xf32> to vector<8x8x1xf32>
    %c0_63 = arith.constant 0 : index
    %c0_64 = arith.constant 0 : index
    %188 = vector.load %arg2[%c0_63, %c0_64] : memref<8x1xf32, #tpu.memory_space<vmem>>, vector<8x1xf32>
    %189 = vector.shape_cast %188 : vector<8x1xf32> to vector<1x8x1xf32>
    %190 = vector.broadcast %189 : vector<1x8x1xf32> to vector<8x8x1xf32>
    %191 = arith.addf %187, %190 : vector<8x8x1xf32>
    %cst_65 = arith.constant dense<0xFF800000> : vector<8x1xf32>
    %192 = vector.multi_reduction <maximumf>, %191, %cst_65 [0] : vector<8x8x1xf32> to vector<8x1xf32>
    %193 = vector.shape_cast %192 : vector<8x1xf32> to vector<1x8x1xf32>
    %194 = vector.broadcast %193 : vector<1x8x1xf32> to vector<8x8x1xf32>
    %195 = arith.subf %191, %194 : vector<8x8x1xf32>
    %196 = math.exp %195 : vector<8x8x1xf32>
    %cst_66 = arith.constant dense<0.000000e+00> : vector<8x1xf32>
    %197 = vector.multi_reduction <add>, %196, %cst_66 [0] : vector<8x8x1xf32> to vector<8x1xf32>
    %198 = vector.shape_cast %197 : vector<8x1xf32> to vector<1x8x1xf32>
    %199 = tpu.reciprocal %198 {approx = true} : vector<1x8x1xf32> -> vector<1x8x1xf32>
    %200 = vector.broadcast %199 : vector<1x8x1xf32> to vector<8x8x1xf32>
    %201 = arith.mulf %196, %200 : vector<8x8x1xf32>
    %202 = vector.shape_cast %176 : vector<64x32xf32> to vector<8x8x32xf32>
    %203 = vector.broadcast %201 : vector<8x8x1xf32> to vector<8x8x32xf32>
    %204 = arith.mulf %203, %202 : vector<8x8x32xf32>
    %cst_67 = arith.constant dense<0.000000e+00> : vector<8x32xf32>
    %205 = vector.multi_reduction <add>, %204, %cst_67 [0] : vector<8x8x32xf32> to vector<8x32xf32>
    %206 = tpu.concatenate %205, %174 in 1 : vector<8x32xf32>, vector<8x32xf32> -> vector<8x64xf32>
    %207 = arith.truncf %206 : vector<8x64xf32> to vector<8x64xbf16>
    %c0_68 = arith.constant 0 : index
    %c0_69 = arith.constant 0 : index
    %208 = vector.load %arg6[%c0_68, %c0_69] : memref<64x32xbf16, #tpu.memory_space<vmem>>, vector<64x32xbf16>
    %cst_70 = arith.constant dense<0.000000e+00> : vector<8x32xf32>
    %209 = tpu.matmul %207, %208, %cst_70 {dimension_numbers = #tpu.dot_dimension_numbers<[1], [0], [0], [1], [0, 0, 1, 1], [], []>} : vector<8x64xbf16>, vector<64x32xbf16>, vector<8x32xf32> -> vector<8x32xf32>
    %210 = vector.broadcast %3 : vector<1x32xf32> to vector<8x32xf32>
    %211 = arith.addf %209, %210 : vector<8x32xf32>
    %212 = math.tanh %211 : vector<8x32xf32>
    %213 = arith.truncf %212 : vector<8x32xf32> to vector<8x32xbf16>
    %c0_71 = arith.constant 0 : index
    %c0_72 = arith.constant 0 : index
    %214 = vector.load %arg7[%c0_71, %c0_72] : memref<32x3xbf16, #tpu.memory_space<vmem>>, vector<32x3xbf16>
    %cst_73 = arith.constant dense<0.000000e+00> : vector<8x3xf32>
    %215 = tpu.matmul %213, %214, %cst_73 {dimension_numbers = #tpu.dot_dimension_numbers<[1], [0], [0], [1], [0, 0, 1, 1], [], []>} : vector<8x32xbf16>, vector<32x3xbf16>, vector<8x3xf32> -> vector<8x3xf32>
    %216 = vector.broadcast %4 : vector<1x3xf32> to vector<8x3xf32>
    %217 = arith.addf %215, %216 : vector<8x3xf32>
    %218 = vector.extract_strided_slice %201 {offsets = [0, 0, 0], sizes = [1, 8, 1], strides = [1, 1, 1]} : vector<8x8x1xf32> to vector<1x8x1xf32>
    %219 = vector.shape_cast %218 : vector<1x8x1xf32> to vector<8x1xf32>
    %220 = vector.extract_strided_slice %201 {offsets = [1, 0, 0], sizes = [1, 8, 1], strides = [1, 1, 1]} : vector<8x8x1xf32> to vector<1x8x1xf32>
    %221 = vector.shape_cast %220 : vector<1x8x1xf32> to vector<8x1xf32>
    %222 = vector.extract_strided_slice %201 {offsets = [2, 0, 0], sizes = [1, 8, 1], strides = [1, 1, 1]} : vector<8x8x1xf32> to vector<1x8x1xf32>
    %223 = vector.shape_cast %222 : vector<1x8x1xf32> to vector<8x1xf32>
    %224 = vector.extract_strided_slice %201 {offsets = [3, 0, 0], sizes = [1, 8, 1], strides = [1, 1, 1]} : vector<8x8x1xf32> to vector<1x8x1xf32>
    %225 = vector.shape_cast %224 : vector<1x8x1xf32> to vector<8x1xf32>
    %226 = vector.extract_strided_slice %201 {offsets = [4, 0, 0], sizes = [1, 8, 1], strides = [1, 1, 1]} : vector<8x8x1xf32> to vector<1x8x1xf32>
    %227 = vector.shape_cast %226 : vector<1x8x1xf32> to vector<8x1xf32>
    %228 = vector.extract_strided_slice %201 {offsets = [5, 0, 0], sizes = [1, 8, 1], strides = [1, 1, 1]} : vector<8x8x1xf32> to vector<1x8x1xf32>
    %229 = vector.shape_cast %228 : vector<1x8x1xf32> to vector<8x1xf32>
    %230 = vector.extract_strided_slice %201 {offsets = [6, 0, 0], sizes = [1, 8, 1], strides = [1, 1, 1]} : vector<8x8x1xf32> to vector<1x8x1xf32>
    %231 = vector.shape_cast %230 : vector<1x8x1xf32> to vector<8x1xf32>
    %232 = vector.extract_strided_slice %201 {offsets = [7, 0, 0], sizes = [1, 8, 1], strides = [1, 1, 1]} : vector<8x8x1xf32> to vector<1x8x1xf32>
    %233 = vector.shape_cast %232 : vector<1x8x1xf32> to vector<8x1xf32>
    %234 = tpu.concatenate %219, %221, %223, %225, %227, %229, %231, %233 in 1 : vector<8x1xf32>, vector<8x1xf32>, vector<8x1xf32>, vector<8x1xf32>, vector<8x1xf32>, vector<8x1xf32>, vector<8x1xf32>, vector<8x1xf32> -> vector<8x8xf32>
    %cst_74 = arith.constant 0.000000e+00 : f32
    %235 = vector.broadcast %cst_74 : f32 to vector<8x117xf32>
    %236 = tpu.concatenate %217, %234, %235 in 1 : vector<8x3xf32>, vector<8x8xf32>, vector<8x117xf32> -> vector<8x128xf32>
    %c0_75 = arith.constant 0 : index
    %c0_76 = arith.constant 0 : index
    %237 = vector.load %arg9[%c0_75, %c0_76] : memref<8x128xf32, #tpu.memory_space<vmem>>, vector<8x128xf32>
    tpu.vector_store %arg9[%c0_75, %c0_76], %236 {strides = array<i32>} : memref<8x128xf32, #tpu.memory_space<vmem>>, vector<8x128xf32>,
    return
  }
  func.func @transform_0(%arg0: i32) -> (i32, i32, i32) {
    %c0_i32 = arith.constant 0 : i32
    %c0_i32_0 = arith.constant 0 : i32
    %c0_i32_1 = arith.constant 0 : i32
    return %c0_i32, %arg0, %c0_i32_0 : i32, i32, i32
  }
  func.func @transform_1(%arg0: i32) -> (i32, i32) {
    %c0_i32 = arith.constant 0 : i32
    %c0_i32_0 = arith.constant 0 : i32
    return %arg0, %c0_i32 : i32, i32
  }
  func.func @transform_2(%arg0: i32) -> (i32, i32) {
    %c0_i32 = arith.constant 0 : i32
    %c0_i32_0 = arith.constant 0 : i32
    %c0_i32_1 = arith.constant 0 : i32
    return %c0_i32, %c0_i32_0 : i32, i32
  }
  func.func @transform_3(%arg0: i32) -> (i32, i32) {
    %c0_i32 = arith.constant 0 : i32
    %c0_i32_0 = arith.constant 0 : i32
    %c0_i32_1 = arith.constant 0 : i32
    return %c0_i32, %c0_i32_0 : i32, i32
  }
  func.func @transform_4(%arg0: i32) -> (i32, i32) {
    %c0_i32 = arith.constant 0 : i32
    %c0_i32_0 = arith.constant 0 : i32
    %c0_i32_1 = arith.constant 0 : i32
    return %c0_i32, %c0_i32_0 : i32, i32
  }
  func.func @transform_5(%arg0: i32) -> (i32, i32) {
    %c0_i32 = arith.constant 0 : i32
    %c0_i32_0 = arith.constant 0 : i32
    %c0_i32_1 = arith.constant 0 : i32
    return %c0_i32, %c0_i32_0 : i32, i32
  }
  func.func @transform_6(%arg0: i32) -> (i32, i32) {
    %c0_i32 = arith.constant 0 : i32
    %c0_i32_0 = arith.constant 0 : i32
    %c0_i32_1 = arith.constant 0 : i32
    return %c0_i32, %c0_i32_0 : i32, i32
  }
  func.func @transform_7(%arg0: i32) -> (i32, i32) {
    %c0_i32 = arith.constant 0 : i32
    %c0_i32_0 = arith.constant 0 : i32
    %c0_i32_1 = arith.constant 0 : i32
    return %c0_i32, %c0_i32_0 : i32, i32
  }
  func.func @transform_8(%arg0: i32) -> (i32, i32) {
    %c0_i32 = arith.constant 0 : i32
    %c0_i32_0 = arith.constant 0 : i32
    return %arg0, %c0_i32 : i32, i32
  }
}

</mosaic_0001>

<llo_original>
// kernel: tpu_custom_call.1
$region0: #{tpu_custom_call.1}
  #allocation0 [shape = 'u32[]', space=smem, size = 0x4, offset = 0x4, fixed_abs, tag = 'smem constant byte address 0x4 - core index']
  #allocation1 [shape = 'u32[144,128]{1,0:T(1,128)}', space=vmem, size = 0x12000, scoped, tag = 'internal scratch']
  #allocation2 [shape = 'f32[64,128]{1,0:T(8,128)}', space=vmem, size = 0x8000, scoped, tag = 'scratch operand']
  #allocation3 [shape = 'f32[64,32]{1,0:T(8,128)}', space=vmem, size = 0x8000, scoped, tag = 'scratch operand']
  %s0 = inlined_call_operand.vmem [shape: f32[8,8,32], index: 0, kind: input, shape index: {}]
  %s1 = inlined_call_operand.vmem [shape: f32[8,1], index: 1, kind: input, shape index: {}]
  %s2 = inlined_call_operand.hbm [shape: bf16[32,128], index: 2, kind: input, shape index: {}]
  %s3 = inlined_call_operand.hbm [shape: bf16[32,128], index: 3, kind: input, shape index: {}]
  %s4 = inlined_call_operand.hbm [shape: bf16[32,32], index: 4, kind: input, shape index: {}]
  %s5 = inlined_call_operand.vmem [shape: bf16[64,32], index: 5, kind: input, shape index: {}]
  %s6 = inlined_call_operand.vmem [shape: bf16[32,3], index: 6, kind: input, shape index: {}]
  %s7 = inlined_call_operand.vmem [shape: f32[8,128], index: 7, kind: input, shape index: {}]
  %s8 = inlined_call_operand.hbm [shape: f32[8,128], index: 8, kind: output, shape index: {}]
  %s9 = sld [smem:[#allocation0]]
  $region54: #{tpu_custom_call.1} parent=0
    _
  %s11 = ssub.s32 1, %s9
  %s12 = scalar_select 0, %s11, %s9
  $region1: #{tpu_custom_call.1} parent=0
    #allocation4 [shape = 'u8[8192]{0}', space=vmem, size = 0x2000, scoped, tag = 'input window, operand 2, single buffered']
    #allocation5 [shape = 's32[1]{0}', space=sflag, size = 0x4, scoped, tag = 'scoped memory for tpu_custom_call.1']
    #allocation6 [shape = 's32[1]{0}', space=sflag, size = 0x4, scoped, tag = 'scoped memory for tpu_custom_call.1']
    #allocation7 [shape = 'u8[8192]{0}', space=vmem, size = 0x2000, scoped, tag = 'input window, operand 3, single buffered']
    #allocation8 [shape = 's32[1]{0}', space=sflag, size = 0x4, scoped, tag = 'scoped memory for tpu_custom_call.1']
    #allocation9 [shape = 'u8[8192]{0}', space=vmem, size = 0x2000, scoped, tag = 'input window, operand 4, single buffered']
    #allocation10 [shape = 'u8[4096]{0}', space=vmem, size = 0x1000, scoped, tag = 'output window, operand 0, single buffered']
    %13 = vsyncpa [#allocation5], 0
    %14 = vsyncpa [#allocation8], 0
    %15 = vsyncpa [#allocation6], 0
    // Predicated region
    $region2: #{tpu_custom_call.1} parent=1 // pred_check
      _
    $region3: #{tpu_custom_call.1} parent=1 // pred_check_branch
      %17 = sbr.rel (0) target = $region5
    $region4: #{tpu_custom_call.1} parent=1 // pred_region
      _
    $region5: #{tpu_custom_call.1} parent=1 // pred_fallthru
      _
    // Predicated region
    $region6: #{tpu_custom_call.1} parent=1 // pred_check
      _
    $region7: #{tpu_custom_call.1} parent=1 // pred_check_branch
      %19 = sbr.rel (0) target = $region9
    $region8: #{tpu_custom_call.1} parent=1 // pred_region
      _
    $region9: #{tpu_custom_call.1} parent=1 // pred_fallthru
      _
    // Predicated region
    $region10: #{tpu_custom_call.1} parent=1 // pred_check
      _
    $region11: #{tpu_custom_call.1} parent=1 // pred_check_branch
      %21 = sbr.rel (0) target = $region13
    $region12: #{tpu_custom_call.1} parent=1 // pred_region
      %s23 = ssub.s32 256, 256
      %24 = vsyncadd [#allocation5], %s23
      %s25 = sshll.u32 [#allocation4], 4
      %s26 = int_to_ptr.vmem [resolvable:$true] %s25
      %31 = dma.hbm_to_vmem [thread:$0]  %s2, 256, %s26, [#allocation5], 64, 64, 4
    $region13: #{tpu_custom_call.1} parent=1 // pred_fallthru
      _
    // Predicated region
    $region14: #{tpu_custom_call.1} parent=1 // pred_check
      _
    $region15: #{tpu_custom_call.1} parent=1 // pred_check_branch
      %33 = sbr.rel (0) target = $region17
    $region16: #{tpu_custom_call.1} parent=1 // pred_region
      %s35 = ssub.s32 256, 256
      %36 = vsyncadd [#allocation8], %s35
      %s37 = sshll.u32 [#allocation7], 4
      %s38 = int_to_ptr.vmem [resolvable:$true] %s37
      %43 = dma.hbm_to_vmem [thread:$0]  %s3, 256, %s38, [#allocation8], 64, 64, 4
    $region17: #{tpu_custom_call.1} parent=1 // pred_fallthru
      _
    // Predicated region
    $region18: #{tpu_custom_call.1} parent=1 // pred_check
      _
    $region19: #{tpu_custom_call.1} parent=1 // pred_check_branch
      %45 = sbr.rel (0) target = $region21
    $region20: #{tpu_custom_call.1} parent=1 // pred_region
      %s47 = ssub.s32 256, 256
      %48 = vsyncadd [#allocation8], %s47
      %s49 = sshll.u32 [#allocation9], 4
      %s50 = int_to_ptr.vmem [resolvable:$true] %s49
      %55 = dma.hbm_to_vmem [thread:$0]  %s4, 256, %s50, [#allocation8], 64, 64, 4
    $region21: #{tpu_custom_call.1} parent=1 // pred_fallthru
      _
    // Predicated region
    $region22: #{tpu_custom_call.1} parent=1 // pred_check
      _
    $region23: #{tpu_custom_call.1} parent=1 // pred_check_branch
      %57 = sbr.rel (0) target = $region25
    $region24: #{tpu_custom_call.1} parent=1 // pred_region
      _
    $region25: #{tpu_custom_call.1} parent=1 // pred_fallthru
      _
    // Predicated region
    $region26: #{tpu_custom_call.1} parent=1 // pred_check
      _
    $region27: #{tpu_custom_call.1} parent=1 // pred_check_branch
      %59 = sbr.rel (0) target = $region29
    $region28: #{tpu_custom_call.1} parent=1 // pred_region
      _
    $region29: #{tpu_custom_call.1} parent=1 // pred_fallthru
      _
    // Predicated region
    $region30: #{tpu_custom_call.1} parent=1 // pred_check
      _
    $region31: #{tpu_custom_call.1} parent=1 // pred_check_branch
      %61 = sbr.rel (0) target = $region33
    $region32: #{tpu_custom_call.1} parent=1 // pred_region
      _
    $region33: #{tpu_custom_call.1} parent=1 // pred_fallthru
      _
    // Predicated region
    $region34: #{tpu_custom_call.1} parent=1 // pred_check
      _
    $region35: #{tpu_custom_call.1} parent=1 // pred_check_branch
      %63 = sbr.rel (0) target = $region37
    $region36: #{tpu_custom_call.1} parent=1 // pred_region
      %64 = dma.done [#allocation5], 256
    $region37: #{tpu_custom_call.1} parent=1 // pred_fallthru
      _
    // Predicated region
    $region38: #{tpu_custom_call.1} parent=1 // pred_check
      _
    $region39: #{tpu_custom_call.1} parent=1 // pred_check_branch
      %66 = sbr.rel (0) target = $region41
    $region40: #{tpu_custom_call.1} parent=1 // pred_region
      %67 = dma.done [#allocation8], 256
    $region41: #{tpu_custom_call.1} parent=1 // pred_fallthru
      _
    // Predicated region
    $region42: #{tpu_custom_call.1} parent=1 // pred_check
      _
    $region43: #{tpu_custom_call.1} parent=1 // pred_check_branch
      %69 = sbr.rel (0) target = $region45
    $region44: #{tpu_custom_call.1} parent=1 // pred_region
      %70 = dma.done [#allocation8], 256
    $region45: #{tpu_custom_call.1} parent=1 // pred_fallthru
      _
    %v72 = vld [vmem:[%s7] sm:$0x1]
    %v73 = vld [vmem:[%s7 + $0x1] sm:$0x1]
    %v74 = vld [vmem:[%s7 + $0x2] sm:$0x1]
    %v75 = vld [vmem:[%s7 + $0x3] sm:$0x1]
    %v76 = vld [vmem:[%s7 + $0x4] sm:$0x1]
    %v77 = vld [vmem:[%s0] sm:$0xff]
    %v78 = vld [vmem:[%s0 + $0x8] sm:$0xff]
    %v79 = vld [vmem:[%s0 + $0x10] sm:$0xff]
    %v80 = vld [vmem:[%s0 + $0x18] sm:$0xff]
    %v81 = vld [vmem:[%s0 + $0x20] sm:$0xff]
    %v82 = vld [vmem:[%s0 + $0x28] sm:$0xff]
    %v83 = vld [vmem:[%s0 + $0x30] sm:$0xff]
    %v84 = vld [vmem:[%s0 + $0x38] sm:$0xff]
    %v85 = vpack.c.bf16 %v78, %v77
    %v86 = vpack.c.bf16 %v80, %v79
    %v87 = vpack.c.bf16 %v82, %v81
    %v88 = vpack.c.bf16 %v84, %v83
    %v89 = vld [vmem:[#allocation4] sm:$0xf]
    %v90 = vld [vmem:[#allocation4 + $0x4] sm:$0xf]
    %v91 = vld [vmem:[#allocation4 + $0x8] sm:$0xf]
    %v92 = vld [vmem:[#allocation4 + $0xc] sm:$0xf]
    %v93 = vlaneseq
    %v94 = vshrl.u32 %v93, 7
    %v95 = vsub.s32 0, %v94
    %v96 = vrot.slane %v72, %v95
    %v101 = vunpack.c.l.b16 %v89
    %v102 = vunpack.c.l.b16 %v90
    %v103 = vunpack.c.l.b16 %v91
    %v104 = vunpack.c.l.b16 %v92
    %v105 = vpack.c.b16 %v102, %v101
    %v106 = vpack.c.b16 %v104, %v103
    %vm109 = vcmask 261120
    %v111 = vsel %vm109, %v85, 0
    %v114 = vsel %vm109, %v86, 0
    %v117 = vsel %vm109, %v87, 0
    %v120 = vsel %vm109, %v88, 0
    %122 = vmatprep.subr.bf16.mxu0 0
    %123 = vmatpush1.bf16.msra.mxu0 %v105
    %124 = vmatprep.subr.bf16.mxu0 0
    %125 = vmatpush1.bf16.msra.mxu0 %v106
    %126 = vmatprep.subr.bf16.mxu0 0
    %127 = vmatpush1.bf16.msra.mxu0 0
    %128 = vmatprep.subr.bf16.mxu0 0
    %129 = vmatpush1.bf16.msra.mxu0 0
    %130 = vmatprep.subr.bf16.mxu0 0
    %131 = vmatpush1.bf16.msra.mxu0 0
    %132 = vmatprep.subr.bf16.mxu0 0
    %133 = vmatpush1.bf16.msra.mxu0 0
    %134 = vmatprep.subr.bf16.mxu0 0
    %135 = vmatpush1.bf16.msra.mxu0 0
    %136 = vmatprep.subr.bf16.mxu0 0
    %137 = vmatpush1.bf16.msra.mxu0 0
    %138 = vmatprep.subr.bf16.mxu0 0
    %139 = vmatpush1.bf16.msra.mxu0 0
    %140 = vmatprep.subr.bf16.mxu0 0
    %141 = vmatpush1.bf16.msra.mxu0 0
    %142 = vmatprep.subr.bf16.mxu0 0
    %143 = vmatpush1.bf16.msra.mxu0 0
    %144 = vmatprep.subr.bf16.mxu0 0
    %145 = vmatpush1.bf16.msra.mxu0 0
    %146 = vmatprep.subr.bf16.mxu0 0
    %147 = vmatpush1.bf16.msra.mxu0 0
    %148 = vmatprep.subr.bf16.mxu0 0
    %149 = vmatpush1.bf16.msra.mxu0 0
    %150 = vmatprep.subr.bf16.mxu0 0
    %151 = vmatpush1.bf16.msra.mxu0 0
    %152 = vmatprep.subr.bf16.mxu0 0
    %153 = vmatpush1.bf16.msra.mxu0 0
    %154 = vmatprep.mubr.bf16.mxu0 0
    %155 = vmatmul.mubr.bf16.gmra.mrb[0].mxu0 %v111
    %v156 = vpop.f32.mrb[0].mxu0
    %v157 = vadd.f32 %v96, %v156
    %v158 = vpop.f32.mrb[0].mxu0
    %v159 = vpop.f32.mrb[0].mxu0
    %v160 = vadd.f32 %v96, %v159
    %v161 = vpop.f32.mrb[0].mxu0
    %162 = vmatprep.mubr.bf16.mxu0 0
    %163 = vmatmul.mubr.bf16.gmra.mrb[0].mxu0 %v114
    %v164 = vpop.f32.mrb[0].mxu0
    %v165 = vadd.f32 %v96, %v164
    %v166 = vpop.f32.mrb[0].mxu0
    %v167 = vpop.f32.mrb[0].mxu0
    %v168 = vadd.f32 %v96, %v167
    %v169 = vpop.f32.mrb[0].mxu0
    %170 = vmatprep.mubr.bf16.mxu0 0
    %171 = vmatmul.mubr.bf16.gmra.mrb[0].mxu0 %v117
    %v172 = vpop.f32.mrb[0].mxu0
    %v173 = vadd.f32 %v96, %v172
    %v174 = vpop.f32.mrb[0].mxu0
    %v175 = vpop.f32.mrb[0].mxu0
    %v176 = vadd.f32 %v96, %v175
    %v177 = vpop.f32.mrb[0].mxu0
    %178 = vmatprep.mubr.bf16.mxu0 0
    %179 = vmatmul.mubr.bf16.gmra.mrb[0].mxu0 %v120
    %v180 = vpop.f32.mrb[0].mxu0
    %v181 = vadd.f32 %v96, %v180
    %v182 = vpop.f32.mrb[0].mxu0
    %v183 = vpop.f32.mrb[0].mxu0
    %v184 = vadd.f32 %v96, %v183
    %v185 = vpop.f32.mrb[0].mxu0
    %186 = vdwg.mxu0
    %187 = vst [vmem:[#allocation2] sm:$0xff] %v157
    %188 = vst [vmem:[#allocation2 + $0x8] sm:$0xff] %v160
    %189 = vst [vmem:[#allocation2 + $0x10] sm:$0xff] %v165
    %190 = vst [vmem:[#allocation2 + $0x18] sm:$0xff] %v168
    %191 = vst [vmem:[#allocation2 + $0x20] sm:$0xff] %v173
    %192 = vst [vmem:[#allocation2 + $0x28] sm:$0xff] %v176
    %193 = vst [vmem:[#allocation2 + $0x30] sm:$0xff] %v181
    %194 = vst [vmem:[#allocation2 + $0x38] sm:$0xff] %v184
    %v195 = vld [vmem:[#allocation7] sm:$0xf]
    %v196 = vld [vmem:[#allocation7 + $0x4] sm:$0xf]
    %v197 = vld [vmem:[#allocation7 + $0x8] sm:$0xf]
    %v198 = vld [vmem:[#allocation7 + $0xc] sm:$0xf]
    %v199 = vld [vmem:[#allocation2] sm:$0xff]
    %v204 = vunpack.c.l.b16 %v195
    %v205 = vunpack.c.l.b16 %v196
    %v206 = vunpack.c.l.b16 %v197
    %v207 = vunpack.c.l.b16 %v198
    %v208 = vpack.c.b16 %v205, %v204
    %v209 = vpack.c.b16 %v207, %v206
    %v213 = vsel %vm109, 0, 0
    %215 = vmatprep.subr.bf16.mxu0 0
    %216 = vmatpush1.bf16.msra.mxu0 %v208
    %217 = vmatprep.subr.bf16.mxu0 0
    %218 = vmatpush1.bf16.msra.mxu0 %v209
    %219 = vmatprep.subr.bf16.mxu0 0
    %220 = vmatpush1.bf16.msra.mxu0 0
    %221 = vmatprep.subr.bf16.mxu0 0
    %222 = vmatpush1.bf16.msra.mxu0 0
    %223 = vmatprep.subr.bf16.mxu0 0
    %224 = vmatpush1.bf16.msra.mxu0 0
    %225 = vmatprep.subr.bf16.mxu0 0
    %226 = vmatpush1.bf16.msra.mxu0 0
    %227 = vmatprep.subr.bf16.mxu0 0
    %228 = vmatpush1.bf16.msra.mxu0 0
    %229 = vmatprep.subr.bf16.mxu0 0
    %230 = vmatpush1.bf16.msra.mxu0 0
    %231 = vmatprep.subr.bf16.mxu0 0
    %232 = vmatpush1.bf16.msra.mxu0 0
    %233 = vmatprep.subr.bf16.mxu0 0
    %234 = vmatpush1.bf16.msra.mxu0 0
    %235 = vmatprep.subr.bf16.mxu0 0
    %236 = vmatpush1.bf16.msra.mxu0 0
    %237 = vmatprep.subr.bf16.mxu0 0
    %238 = vmatpush1.bf16.msra.mxu0 0
    %239 = vmatprep.subr.bf16.mxu0 0
    %240 = vmatpush1.bf16.msra.mxu0 0
    %241 = vmatprep.subr.bf16.mxu0 0
    %242 = vmatpush1.bf16.msra.mxu0 0
    %243 = vmatprep.subr.bf16.mxu0 0
    %244 = vmatpush1.bf16.msra.mxu0 0
    %245 = vmatprep.subr.bf16.mxu0 0
    %246 = vmatpush1.bf16.msra.mxu0 0
    %247 = vmatprep.mubr.bf16.mxu0 0
    %248 = vmatmul.mubr.bf16.gmra.mrb[0].mxu0 %v213
    %v249 = vpop.f32.mrb[0].mxu0
    %v250 = vadd.f32 0.0, %v249
    %v251 = vpop.f32.mrb[0].mxu0
    %v252 = vpop.f32.mrb[0].mxu0
    %v253 = vpop.f32.mrb[0].mxu0
    %254 = vdwg.mxu0
    %v255 = vadd.f32 %v199, %v250
    %v256 = vxor.u32 %v255, 2147483648
    %v257 = vmul.f32 %v256, 1.442695
    %v258 = vpow.pop %v257
    %v259 = vadd.f32 %v258, 1.0
    %v260 = vrcp.pop %v259
    %v261 = vmul.f32 1.0, %v260
    %v262 = vtanh.pop %v255
    %v263 = vmul.f32 %v261, 0.0
    %265 = vrot.lane.b32.xlu0 %v262, 64
    %v266 = vpop.permute.xlu0 %265
    %v268 = vmul.f32 %v261, %v266
    %270 = vrot.lane.b32.xlu0 %v268, 32
    %v271 = vpop.permute.xlu0 %270
    %v273 = vadd.f32 %v263, %v271
    %v274 = vtanh.pop %v273
    %276 = vrot.lane.b32.xlu0 %v274, 64
    %v277 = vpop.permute.xlu0 %276
    %v279 = vmul.f32 %v261, %v277
    %281 = vrot.lane.b32.xlu0 %v279, 32
    %v282 = vpop.permute.xlu0 %281
    %284 = vst.msk [vmem:[#allocation3] sm:$0xff] %vm109, %v282
    %v285 = vld [vmem:[#allocation2 + $0x8] sm:$0xff]
    %v286 = vpack.c.bf16 %v279, %v279
    %288 = vrot.lane.b32.xlu0 %v286, 32
    %v289 = vpop.permute.xlu0 %288
    %v291 = vsel %vm109, %v289, 0
    %293 = vmatprep.subr.bf16.mxu0 0
    %294 = vmatpush1.bf16.msra.mxu0 %v208
    %295 = vmatprep.subr.bf16.mxu0 0
    %296 = vmatpush1.bf16.msra.mxu0 %v209
    %297 = vmatprep.subr.bf16.mxu0 0
    %298 = vmatpush1.bf16.msra.mxu0 0
    %299 = vmatprep.subr.bf16.mxu0 0
    %300 = vmatpush1.bf16.msra.mxu0 0
    %301 = vmatprep.subr.bf16.mxu0 0
    %302 = vmatpush1.bf16.msra.mxu0 0
    %303 = vmatprep.subr.bf16.mxu0 0
    %304 = vmatpush1.bf16.msra.mxu0 0
    %305 = vmatprep.subr.bf16.mxu0 0
    %306 = vmatpush1.bf16.msra.mxu0 0
    %307 = vmatprep.subr.bf16.mxu0 0
    %308 = vmatpush1.bf16.msra.mxu0 0
    %309 = vmatprep.subr.bf16.mxu0 0
    %310 = vmatpush1.bf16.msra.mxu0 0
    %311 = vmatprep.subr.bf16.mxu0 0
    %312 = vmatpush1.bf16.msra.mxu0 0
    %313 = vmatprep.subr.bf16.mxu0 0
    %314 = vmatpush1.bf16.msra.mxu0 0
    %315 = vmatprep.subr.bf16.mxu0 0
    %316 = vmatpush1.bf16.msra.mxu0 0
    %317 = vmatprep.subr.bf16.mxu0 0
    %318 = vmatpush1.bf16.msra.mxu0 0
    %319 = vmatprep.subr.bf16.mxu0 0
    %320 = vmatpush1.bf16.msra.mxu0 0
    %321 = vmatprep.subr.bf16.mxu0 0
    %322 = vmatpush1.bf16.msra.mxu0 0
    %323 = vmatprep.subr.bf16.mxu0 0
    %324 = vmatpush1.bf16.msra.mxu0 0
    %325 = vmatprep.mubr.bf16.mxu0 0
    %326 = vmatmul.mubr.bf16.gmra.mrb[0].mxu0 %v291
    %v327 = vpop.f32.mrb[0].mxu0
    %v328 = vadd.f32 0.0, %v327
    %v329 = vpop.f32.mrb[0].mxu0
    %v330 = vpop.f32.mrb[0].mxu0
    %v331 = vpop.f32.mrb[0].mxu0
    %332 = vdwg.mxu0
    %v333 = vadd.f32 %v285, %v328
    %v334 = vxor.u32 %v333, 2147483648
    %v335 = vmul.f32 %v334, 1.442695
    %v336 = vpow.pop %v335
    %v337 = vadd.f32 %v336, 1.0
    %v338 = vrcp.pop %v337
    %v339 = vmul.f32 1.0, %v338
    %v340 = vtanh.pop %v333
    %v341 = vmul.f32 %v339, %v273
    %343 = vrot.lane.b32.xlu0 %v340, 64
    %v344 = vpop.permute.xlu0 %343
    %v346 = vmul.f32 %v339, %v344
    %348 = vrot.lane.b32.xlu0 %v346, 32
    %v349 = vpop.permute.xlu0 %348
    %v351 = vadd.f32 %v341, %v349
    %v352 = vtanh.pop %v351
    %354 = vrot.lane.b32.xlu0 %v352, 64
    %v355 = vpop.permute.xlu0 %354
    %v357 = vmul.f32 %v339, %v355
    %359 = vrot.lane.b32.xlu0 %v357, 32
    %v360 = vpop.permute.xlu0 %359
    %362 = vst.msk [vmem:[#allocation3 + $0x8] sm:$0xff] %vm109, %v360
    %v363 = vld [vmem:[#allocation2 + $0x10] sm:$0xff]
    %v364 = vpack.c.bf16 %v357, %v357
    %366 = vrot.lane.b32.xlu0 %v364, 32
    %v367 = vpop.permute.xlu0 %366
    %v369 = vsel %vm109, %v367, 0
    %371 = vmatprep.subr.bf16.mxu0 0
    %372 = vmatpush1.bf16.msra.mxu0 %v208
    %373 = vmatprep.subr.bf16.mxu0 0
    %374 = vmatpush1.bf16.msra.mxu0 %v209
    %375 = vmatprep.subr.bf16.mxu0 0
    %376 = vmatpush1.bf16.msra.mxu0 0
    %377 = vmatprep.subr.bf16.mxu0 0
    %378 = vmatpush1.bf16.msra.mxu0 0
    %379 = vmatprep.subr.bf16.mxu0 0
    %380 = vmatpush1.bf16.msra.mxu0 0
    %381 = vmatprep.subr.bf16.mxu0 0
    %382 = vmatpush1.bf16.msra.mxu0 0
    %383 = vmatprep.subr.bf16.mxu0 0
    %384 = vmatpush1.bf16.msra.mxu0 0
    %385 = vmatprep.subr.bf16.mxu0 0
    %386 = vmatpush1.bf16.msra.mxu0 0
    %387 = vmatprep.subr.bf16.mxu0 0
    %388 = vmatpush1.bf16.msra.mxu0 0
    %389 = vmatprep.subr.bf16.mxu0 0
    %390 = vmatpush1.bf16.msra.mxu0 0
    %391 = vmatprep.subr.bf16.mxu0 0
    %392 = vmatpush1.bf16.msra.mxu0 0
    %393 = vmatprep.subr.bf16.mxu0 0
    %394 = vmatpush1.bf16.msra.mxu0 0
    %395 = vmatprep.subr.bf16.mxu0 0
    %396 = vmatpush1.bf16.msra.mxu0 0
    %397 = vmatprep.subr.bf16.mxu0 0
    %398 = vmatpush1.bf16.msra.mxu0 0
    %399 = vmatprep.subr.bf16.mxu0 0
    %400 = vmatpush1.bf16.msra.mxu0 0
    %401 = vmatprep.subr.bf16.mxu0 0
    %402 = vmatpush1.bf16.msra.mxu0 0
    %403 = vmatprep.mubr.bf16.mxu0 0
    %404 = vmatmul.mubr.bf16.gmra.mrb[0].mxu0 %v369
    %v405 = vpop.f32.mrb[0].mxu0
    %v406 = vadd.f32 0.0, %v405
    %v407 = vpop.f32.mrb[0].mxu0
    %v408 = vpop.f32.mrb[0].mxu0
    %v409 = vpop.f32.mrb[0].mxu0
    %410 = vdwg.mxu0
    %v411 = vadd.f32 %v363, %v406
    %v412 = vxor.u32 %v411, 2147483648
    %v413 = vmul.f32 %v412, 1.442695
    %v414 = vpow.pop %v413
    %v415 = vadd.f32 %v414, 1.0
    %v416 = vrcp.pop %v415
    %v417 = vmul.f32 1.0, %v416
    %v418 = vtanh.pop %v411
    %v419 = vmul.f32 %v417, %v351
    %421 = vrot.lane.b32.xlu0 %v418, 64
    %v422 = vpop.permute.xlu0 %421
    %v424 = vmul.f32 %v417, %v422
    %426 = vrot.lane.b32.xlu0 %v424, 32
    %v427 = vpop.permute.xlu0 %426
    %v429 = vadd.f32 %v419, %v427
    %v430 = vtanh.pop %v429
    %432 = vrot.lane.b32.xlu0 %v430, 64
    %v433 = vpop.permute.xlu0 %432
    %v435 = vmul.f32 %v417, %v433
    %437 = vrot.lane.b32.xlu0 %v435, 32
    %v438 = vpop.permute.xlu0 %437
    %440 = vst.msk [vmem:[#allocation3 + $0x10] sm:$0xff] %vm109, %v438
    %v441 = vld [vmem:[#allocation2 + $0x18] sm:$0xff]
    %v442 = vpack.c.bf16 %v435, %v435
    %444 = vrot.lane.b32.xlu0 %v442, 32
    %v445 = vpop.permute.xlu0 %444
    %v447 = vsel %vm109, %v445, 0
    %449 = vmatprep.subr.bf16.mxu0 0
    %450 = vmatpush1.bf16.msra.mxu0 %v208
    %451 = vmatprep.subr.bf16.mxu0 0
    %452 = vmatpush1.bf16.msra.mxu0 %v209
    %453 = vmatprep.subr.bf16.mxu0 0
    %454 = vmatpush1.bf16.msra.mxu0 0
    %455 = vmatprep.subr.bf16.mxu0 0
    %456 = vmatpush1.bf16.msra.mxu0 0
    %457 = vmatprep.subr.bf16.mxu0 0
    %458 = vmatpush1.bf16.msra.mxu0 0
    %459 = vmatprep.subr.bf16.mxu0 0
    %460 = vmatpush1.bf16.msra.mxu0 0
    %461 = vmatprep.subr.bf16.mxu0 0
    %462 = vmatpush1.bf16.msra.mxu0 0
    %463 = vmatprep.subr.bf16.mxu0 0
    %464 = vmatpush1.bf16.msra.mxu0 0
    %465 = vmatprep.subr.bf16.mxu0 0
    %466 = vmatpush1.bf16.msra.mxu0 0
    %467 = vmatprep.subr.bf16.mxu0 0
    %468 = vmatpush1.bf16.msra.mxu0 0
    %469 = vmatprep.subr.bf16.mxu0 0
    %470 = vmatpush1.bf16.msra.mxu0 0
    %471 = vmatprep.subr.bf16.mxu0 0
    %472 = vmatpush1.bf16.msra.mxu0 0
    %473 = vmatprep.subr.bf16.mxu0 0
    %474 = vmatpush1.bf16.msra.mxu0 0
    %475 = vmatprep.subr.bf16.mxu0 0
    %476 = vmatpush1.bf16.msra.mxu0 0
    %477 = vmatprep.subr.bf16.mxu0 0
    %478 = vmatpush1.bf16.msra.mxu0 0
    %479 = vmatprep.subr.bf16.mxu0 0
    %480 = vmatpush1.bf16.msra.mxu0 0
    %481 = vmatprep.mubr.bf16.mxu0 0
    %482 = vmatmul.mubr.bf16.gmra.mrb[0].mxu0 %v447
    %v483 = vpop.f32.mrb[0].mxu0
    %v484 = vadd.f32 0.0, %v483
    %v485 = vpop.f32.mrb[0].mxu0
    %v486 = vpop.f32.mrb[0].mxu0
    %v487 = vpop.f32.mrb[0].mxu0
    %488 = vdwg.mxu0
    %v489 = vadd.f32 %v441, %v484
    %v490 = vxor.u32 %v489, 2147483648
    %v491 = vmul.f32 %v490, 1.442695
    %v492 = vpow.pop %v491
    %v493 = vadd.f32 %v492, 1.0
    %v494 = vrcp.pop %v493
    %v495 = vmul.f32 1.0, %v494
    %v496 = vtanh.pop %v489
    %v497 = vmul.f32 %v495, %v429
    %499 = vrot.lane.b32.xlu0 %v496, 64
    %v500 = vpop.permute.xlu0 %499
    %v502 = vmul.f32 %v495, %v500
    %504 = vrot.lane.b32.xlu0 %v502, 32
    %v505 = vpop.permute.xlu0 %504
    %v507 = vadd.f32 %v497, %v505
    %v508 = vtanh.pop %v507
    %510 = vrot.lane.b32.xlu0 %v508, 64
    %v511 = vpop.permute.xlu0 %510
    %v513 = vmul.f32 %v495, %v511
    %515 = vrot.lane.b32.xlu0 %v513, 32
    %v516 = vpop.permute.xlu0 %515
    %518 = vst.msk [vmem:[#allocation3 + $0x18] sm:$0xff] %vm109, %v516
    %v519 = vld [vmem:[#allocation2 + $0x20] sm:$0xff]
    %v520 = vpack.c.bf16 %v513, %v513
    %522 = vrot.lane.b32.xlu0 %v520, 32
    %v523 = vpop.permute.xlu0 %522
    %v525 = vsel %vm109, %v523, 0
    %527 = vmatprep.subr.bf16.mxu0 0
    %528 = vmatpush1.bf16.msra.mxu0 %v208
    %529 = vmatprep.subr.bf16.mxu0 0
    %530 = vmatpush1.bf16.msra.mxu0 %v209
    %531 = vmatprep.subr.bf16.mxu0 0
    %532 = vmatpush1.bf16.msra.mxu0 0
    %533 = vmatprep.subr.bf16.mxu0 0
    %534 = vmatpush1.bf16.msra.mxu0 0
    %535 = vmatprep.subr.bf16.mxu0 0
    %536 = vmatpush1.bf16.msra.mxu0 0
    %537 = vmatprep.subr.bf16.mxu0 0
    %538 = vmatpush1.bf16.msra.mxu0 0
    %539 = vmatprep.subr.bf16.mxu0 0
    %540 = vmatpush1.bf16.msra.mxu0 0
    %541 = vmatprep.subr.bf16.mxu0 0
    %542 = vmatpush1.bf16.msra.mxu0 0
    %543 = vmatprep.subr.bf16.mxu0 0
    %544 = vmatpush1.bf16.msra.mxu0 0
    %545 = vmatprep.subr.bf16.mxu0 0
    %546 = vmatpush1.bf16.msra.mxu0 0
    %547 = vmatprep.subr.bf16.mxu0 0
    %548 = vmatpush1.bf16.msra.mxu0 0
    %549 = vmatprep.subr.bf16.mxu0 0
    %550 = vmatpush1.bf16.msra.mxu0 0
    %551 = vmatprep.subr.bf16.mxu0 0
    %552 = vmatpush1.bf16.msra.mxu0 0
    %553 = vmatprep.subr.bf16.mxu0 0
    %554 = vmatpush1.bf16.msra.mxu0 0
    %555 = vmatprep.subr.bf16.mxu0 0
    %556 = vmatpush1.bf16.msra.mxu0 0
    %557 = vmatprep.subr.bf16.mxu0 0
    %558 = vmatpush1.bf16.msra.mxu0 0
    %559 = vmatprep.mubr.bf16.mxu0 0
    %560 = vmatmul.mubr.bf16.gmra.mrb[0].mxu0 %v525
    %v561 = vpop.f32.mrb[0].mxu0
    %v562 = vadd.f32 0.0, %v561
    %v563 = vpop.f32.mrb[0].mxu0
    %v564 = vpop.f32.mrb[0].mxu0
    %v565 = vpop.f32.mrb[0].mxu0
    %566 = vdwg.mxu0
    %v567 = vadd.f32 %v519, %v562
    %v568 = vxor.u32 %v567, 2147483648
    %v569 = vmul.f32 %v568, 1.442695
    %v570 = vpow.pop %v569
    %v571 = vadd.f32 %v570, 1.0
    %v572 = vrcp.pop %v571
    %v573 = vmul.f32 1.0, %v572
    %v574 = vtanh.pop %v567
    %v575 = vmul.f32 %v573, %v507
    %577 = vrot.lane.b32.xlu0 %v574, 64
    %v578 = vpop.permute.xlu0 %577
    %v580 = vmul.f32 %v573, %v578
    %582 = vrot.lane.b32.xlu0 %v580, 32
    %v583 = vpop.permute.xlu0 %582
    %v585 = vadd.f32 %v575, %v583
    %v586 = vtanh.pop %v585
    %588 = vrot.lane.b32.xlu0 %v586, 64
    %v589 = vpop.permute.xlu0 %588
    %v591 = vmul.f32 %v573, %v589
    %593 = vrot.lane.b32.xlu0 %v591, 32
    %v594 = vpop.permute.xlu0 %593
    %596 = vst.msk [vmem:[#allocation3 + $0x20] sm:$0xff] %vm109, %v594
    %v597 = vld [vmem:[#allocation2 + $0x28] sm:$0xff]
    %v598 = vpack.c.bf16 %v591, %v591
    %600 = vrot.lane.b32.xlu0 %v598, 32
    %v601 = vpop.permute.xlu0 %600
    %v603 = vsel %vm109, %v601, 0
    %605 = vmatprep.subr.bf16.mxu0 0
    %606 = vmatpush1.bf16.msra.mxu0 %v208
    %607 = vmatprep.subr.bf16.mxu0 0
    %608 = vmatpush1.bf16.msra.mxu0 %v209
    %609 = vmatprep.subr.bf16.mxu0 0
    %610 = vmatpush1.bf16.msra.mxu0 0
    %611 = vmatprep.subr.bf16.mxu0 0
    %612 = vmatpush1.bf16.msra.mxu0 0
    %613 = vmatprep.subr.bf16.mxu0 0
    %614 = vmatpush1.bf16.msra.mxu0 0
    %615 = vmatprep.subr.bf16.mxu0 0
    %616 = vmatpush1.bf16.msra.mxu0 0
    %617 = vmatprep.subr.bf16.mxu0 0
    %618 = vmatpush1.bf16.msra.mxu0 0
    %619 = vmatprep.subr.bf16.mxu0 0
    %620 = vmatpush1.bf16.msra.mxu0 0
    %621 = vmatprep.subr.bf16.mxu0 0
    %622 = vmatpush1.bf16.msra.mxu0 0
    %623 = vmatprep.subr.bf16.mxu0 0
    %624 = vmatpush1.bf16.msra.mxu0 0
    %625 = vmatprep.subr.bf16.mxu0 0
    %626 = vmatpush1.bf16.msra.mxu0 0
    %627 = vmatprep.subr.bf16.mxu0 0
    %628 = vmatpush1.bf16.msra.mxu0 0
    %629 = vmatprep.subr.bf16.mxu0 0
    %630 = vmatpush1.bf16.msra.mxu0 0
    %631 = vmatprep.subr.bf16.mxu0 0
    %632 = vmatpush1.bf16.msra.mxu0 0
    %633 = vmatprep.subr.bf16.mxu0 0
    %634 = vmatpush1.bf16.msra.mxu0 0
    %635 = vmatprep.subr.bf16.mxu0 0
    %636 = vmatpush1.bf16.msra.mxu0 0
    %637 = vmatprep.mubr.bf16.mxu0 0
    %638 = vmatmul.mubr.bf16.gmra.mrb[0].mxu0 %v603
    %v639 = vpop.f32.mrb[0].mxu0
    %v640 = vadd.f32 0.0, %v639
    %v641 = vpop.f32.mrb[0].mxu0
    %v642 = vpop.f32.mrb[0].mxu0
    %v643 = vpop.f32.mrb[0].mxu0
    %644 = vdwg.mxu0
    %v645 = vadd.f32 %v597, %v640
    %v646 = vxor.u32 %v645, 2147483648
    %v647 = vmul.f32 %v646, 1.442695
    %v648 = vpow.pop %v647
    %v649 = vadd.f32 %v648, 1.0
    %v650 = vrcp.pop %v649
    %v651 = vmul.f32 1.0, %v650
    %v652 = vtanh.pop %v645
    %v653 = vmul.f32 %v651, %v585
    %655 = vrot.lane.b32.xlu0 %v652, 64
    %v656 = vpop.permute.xlu0 %655
    %v658 = vmul.f32 %v651, %v656
    %660 = vrot.lane.b32.xlu0 %v658, 32
    %v661 = vpop.permute.xlu0 %660
    %v663 = vadd.f32 %v653, %v661
    %v664 = vtanh.pop %v663
    %666 = vrot.lane.b32.xlu0 %v664, 64
    %v667 = vpop.permute.xlu0 %666
    %v669 = vmul.f32 %v651, %v667
    %671 = vrot.lane.b32.xlu0 %v669, 32
    %v672 = vpop.permute.xlu0 %671
    %674 = vst.msk [vmem:[#allocation3 + $0x28] sm:$0xff] %vm109, %v672
    %v675 = vld [vmem:[#allocation2 + $0x30] sm:$0xff]
    %v676 = vpack.c.bf16 %v669, %v669
    %678 = vrot.lane.b32.xlu0 %v676, 32
    %v679 = vpop.permute.xlu0 %678
    %v681 = vsel %vm109, %v679, 0
    %683 = vmatprep.subr.bf16.mxu0 0
    %684 = vmatpush1.bf16.msra.mxu0 %v208
    %685 = vmatprep.subr.bf16.mxu0 0
    %686 = vmatpush1.bf16.msra.mxu0 %v209
    %687 = vmatprep.subr.bf16.mxu0 0
    %688 = vmatpush1.bf16.msra.mxu0 0
    %689 = vmatprep.subr.bf16.mxu0 0
    %690 = vmatpush1.bf16.msra.mxu0 0
    %691 = vmatprep.subr.bf16.mxu0 0
    %692 = vmatpush1.bf16.msra.mxu0 0
    %693 = vmatprep.subr.bf16.mxu0 0
    %694 = vmatpush1.bf16.msra.mxu0 0
    %695 = vmatprep.subr.bf16.mxu0 0
    %696 = vmatpush1.bf16.msra.mxu0 0
    %697 = vmatprep.subr.bf16.mxu0 0
    %698 = vmatpush1.bf16.msra.mxu0 0
    %699 = vmatprep.subr.bf16.mxu0 0
    %700 = vmatpush1.bf16.msra.mxu0 0
    %701 = vmatprep.subr.bf16.mxu0 0
    %702 = vmatpush1.bf16.msra.mxu0 0
    %703 = vmatprep.subr.bf16.mxu0 0
    %704 = vmatpush1.bf16.msra.mxu0 0
    %705 = vmatprep.subr.bf16.mxu0 0
    %706 = vmatpush1.bf16.msra.mxu0 0
    %707 = vmatprep.subr.bf16.mxu0 0
    %708 = vmatpush1.bf16.msra.mxu0 0
    %709 = vmatprep.subr.bf16.mxu0 0
    %710 = vmatpush1.bf16.msra.mxu0 0
    %711 = vmatprep.subr.bf16.mxu0 0
    %712 = vmatpush1.bf16.msra.mxu0 0
    %713 = vmatprep.subr.bf16.mxu0 0
    %714 = vmatpush1.bf16.msra.mxu0 0
    %715 = vmatprep.mubr.bf16.mxu0 0
    %716 = vmatmul.mubr.bf16.gmra.mrb[0].mxu0 %v681
    %v717 = vpop.f32.mrb[0].mxu0
    %v718 = vadd.f32 0.0, %v717
    %v719 = vpop.f32.mrb[0].mxu0
    %v720 = vpop.f32.mrb[0].mxu0
    %v721 = vpop.f32.mrb[0].mxu0
    %722 = vdwg.mxu0
    %v723 = vadd.f32 %v675, %v718
    %v724 = vxor.u32 %v723, 2147483648
    %v725 = vmul.f32 %v724, 1.442695
    %v726 = vpow.pop %v725
    %v727 = vadd.f32 %v726, 1.0
    %v728 = vrcp.pop %v727
    %v729 = vmul.f32 1.0, %v728
    %v730 = vtanh.pop %v723
    %v731 = vmul.f32 %v729, %v663
    %733 = vrot.lane.b32.xlu0 %v730, 64
    %v734 = vpop.permute.xlu0 %733
    %v736 = vmul.f32 %v729, %v734
    %738 = vrot.lane.b32.xlu0 %v736, 32
    %v739 = vpop.permute.xlu0 %738
    %v741 = vadd.f32 %v731, %v739
    %v742 = vtanh.pop %v741
    %744 = vrot.lane.b32.xlu0 %v742, 64
    %v745 = vpop.permute.xlu0 %744
    %v747 = vmul.f32 %v729, %v745
    %749 = vrot.lane.b32.xlu0 %v747, 32
    %v750 = vpop.permute.xlu0 %749
    %752 = vst.msk [vmem:[#allocation3 + $0x30] sm:$0xff] %vm109, %v750
    %v753 = vld [vmem:[#allocation2 + $0x38] sm:$0xff]
    %v754 = vpack.c.bf16 %v747, %v747
    %756 = vrot.lane.b32.xlu0 %v754, 32
    %v757 = vpop.permute.xlu0 %756
    %v759 = vsel %vm109, %v757, 0
    %761 = vmatprep.subr.bf16.mxu0 0
    %762 = vmatpush1.bf16.msra.mxu0 %v208
    %763 = vmatprep.subr.bf16.mxu0 0
    %764 = vmatpush1.bf16.msra.mxu0 %v209
    %765 = vmatprep.subr.bf16.mxu0 0
    %766 = vmatpush1.bf16.msra.mxu0 0
    %767 = vmatprep.subr.bf16.mxu0 0
    %768 = vmatpush1.bf16.msra.mxu0 0
    %769 = vmatprep.subr.bf16.mxu0 0
    %770 = vmatpush1.bf16.msra.mxu0 0
    %771 = vmatprep.subr.bf16.mxu0 0
    %772 = vmatpush1.bf16.msra.mxu0 0
    %773 = vmatprep.subr.bf16.mxu0 0
    %774 = vmatpush1.bf16.msra.mxu0 0
    %775 = vmatprep.subr.bf16.mxu0 0
    %776 = vmatpush1.bf16.msra.mxu0 0
    %777 = vmatprep.subr.bf16.mxu0 0
    %778 = vmatpush1.bf16.msra.mxu0 0
    %779 = vmatprep.subr.bf16.mxu0 0
    %780 = vmatpush1.bf16.msra.mxu0 0
    %781 = vmatprep.subr.bf16.mxu0 0
    %782 = vmatpush1.bf16.msra.mxu0 0
    %783 = vmatprep.subr.bf16.mxu0 0
    %784 = vmatpush1.bf16.msra.mxu0 0
    %785 = vmatprep.subr.bf16.mxu0 0
    %786 = vmatpush1.bf16.msra.mxu0 0
    %787 = vmatprep.subr.bf16.mxu0 0
    %788 = vmatpush1.bf16.msra.mxu0 0
    %789 = vmatprep.subr.bf16.mxu0 0
    %790 = vmatpush1.bf16.msra.mxu0 0
    %791 = vmatprep.subr.bf16.mxu0 0
    %792 = vmatpush1.bf16.msra.mxu0 0
    %793 = vmatprep.mubr.bf16.mxu0 0
    %794 = vmatmul.mubr.bf16.gmra.mrb[0].mxu0 %v759
    %v795 = vpop.f32.mrb[0].mxu0
    %v796 = vadd.f32 0.0, %v795
    %v797 = vpop.f32.mrb[0].mxu0
    %v798 = vpop.f32.mrb[0].mxu0
    %v799 = vpop.f32.mrb[0].mxu0
    %800 = vdwg.mxu0
    %v801 = vadd.f32 %v753, %v796
    %v802 = vxor.u32 %v801, 2147483648
    %v803 = vmul.f32 %v802, 1.442695
    %v804 = vpow.pop %v803
    %v805 = vadd.f32 %v804, 1.0
    %v806 = vrcp.pop %v805
    %v807 = vmul.f32 1.0, %v806
    %v808 = vtanh.pop %v801
    %v809 = vmul.f32 %v807, %v741
    %811 = vrot.lane.b32.xlu0 %v808, 64
    %v812 = vpop.permute.xlu0 %811
    %v814 = vmul.f32 %v807, %v812
    %816 = vrot.lane.b32.xlu0 %v814, 32
    %v817 = vpop.permute.xlu0 %816
    %v819 = vadd.f32 %v809, %v817
    %v820 = vtanh.pop %v819
    %822 = vrot.lane.b32.xlu0 %v820, 64
    %v823 = vpop.permute.xlu0 %822
    %v825 = vmul.f32 %v807, %v823
    %827 = vrot.lane.b32.xlu0 %v825, 32
    %v828 = vpop.permute.xlu0 %827
    %830 = vst.msk [vmem:[#allocation3 + $0x38] sm:$0xff] %vm109, %v828
    %v831 = vld [vmem:[#allocation3] sm:$0xff]
    %v832 = vld [vmem:[#allocation3 + $0x8] sm:$0xff]
    %v833 = vld [vmem:[#allocation3 + $0x10] sm:$0xff]
    %v834 = vld [vmem:[#allocation3 + $0x18] sm:$0xff]
    %v835 = vld [vmem:[#allocation3 + $0x20] sm:$0xff]
    %v836 = vld [vmem:[#allocation3 + $0x28] sm:$0xff]
    %v837 = vld [vmem:[#allocation3 + $0x30] sm:$0xff]
    %v838 = vld [vmem:[#allocation3 + $0x38] sm:$0xff]
    %v839 = vpack.c.bf16 %v832, %v831
    %v840 = vpack.c.bf16 %v834, %v833
    %v841 = vpack.c.bf16 %v836, %v835
    %v842 = vpack.c.bf16 %v838, %v837
    %v843 = vld [vmem:[#allocation9] sm:$0xf]
    %v844 = vld [vmem:[#allocation9 + $0x4] sm:$0xf]
    %v845 = vld [vmem:[#allocation9 + $0x8] sm:$0xf]
    %v846 = vld [vmem:[#allocation9 + $0xc] sm:$0xf]
    %v847 = vlaneseq
    %v848 = vshrl.u32 %v847, 7
    %v849 = vsub.s32 0, %v848
    %v850 = vrot.slane %v73, %v849
    %v855 = vunpack.c.l.b16 %v843
    %v856 = vunpack.c.l.b16 %v844
    %v857 = vunpack.c.l.b16 %v845
    %v858 = vunpack.c.l.b16 %v846
    %v859 = vpack.c.b16 %v856, %v855
    %v860 = vpack.c.b16 %v858, %v857
    %v864 = vsel %vm109, %v839, 0
    %v867 = vsel %vm109, %v840, 0
    %v870 = vsel %vm109, %v841, 0
    %v873 = vsel %vm109, %v842, 0
    %875 = vmatprep.subr.bf16.mxu0 0
    %876 = vmatpush1.bf16.msra.mxu0 %v859
    %877 = vmatprep.subr.bf16.mxu0 0
    %878 = vmatpush1.bf16.msra.mxu0 %v860
    %879 = vmatprep.subr.bf16.mxu0 0
    %880 = vmatpush1.bf16.msra.mxu0 0
    %881 = vmatprep.subr.bf16.mxu0 0
    %882 = vmatpush1.bf16.msra.mxu0 0
    %883 = vmatprep.subr.bf16.mxu0 0
    %884 = vmatpush1.bf16.msra.mxu0 0
    %885 = vmatprep.subr.bf16.mxu0 0
    %886 = vmatpush1.bf16.msra.mxu0 0
    %887 = vmatprep.subr.bf16.mxu0 0
    %888 = vmatpush1.bf16.msra.mxu0 0
    %889 = vmatprep.subr.bf16.mxu0 0
    %890 = vmatpush1.bf16.msra.mxu0 0
    %891 = vmatprep.subr.bf16.mxu0 0
    %892 = vmatpush1.bf16.msra.mxu0 0
    %893 = vmatprep.subr.bf16.mxu0 0
    %894 = vmatpush1.bf16.msra.mxu0 0
    %895 = vmatprep.subr.bf16.mxu0 0
    %896 = vmatpush1.bf16.msra.mxu0 0
    %897 = vmatprep.subr.bf16.mxu0 0
    %898 = vmatpush1.bf16.msra.mxu0 0
    %899 = vmatprep.subr.bf16.mxu0 0
    %900 = vmatpush1.bf16.msra.mxu0 0
    %901 = vmatprep.subr.bf16.mxu0 0
    %902 = vmatpush1.bf16.msra.mxu0 0
    %903 = vmatprep.subr.bf16.mxu0 0
    %904 = vmatpush1.bf16.msra.mxu0 0
    %905 = vmatprep.subr.bf16.mxu0 0
    %906 = vmatpush1.bf16.msra.mxu0 0
    %907 = vmatprep.mubr.bf16.mxu0 0
    %908 = vmatmul.mubr.bf16.gmra.mrb[0].mxu0 %v864
    %v909 = vpop.f32.mrb[0].mxu0
    %v910 = vadd.f32 %v850, %v909
    %v911 = vpop.f32.mrb[0].mxu0
    %v912 = vpop.f32.mrb[0].mxu0
    %v913 = vadd.f32 %v850, %v912
    %v914 = vpop.f32.mrb[0].mxu0
    %915 = vmatprep.mubr.bf16.mxu0 0
    %916 = vmatmul.mubr.bf16.gmra.mrb[0].mxu0 %v867
    %v917 = vpop.f32.mrb[0].mxu0
    %v918 = vadd.f32 %v850, %v917
    %v919 = vpop.f32.mrb[0].mxu0
    %v920 = vpop.f32.mrb[0].mxu0
    %v921 = vadd.f32 %v850, %v920
    %v922 = vpop.f32.mrb[0].mxu0
    %923 = vmatprep.mubr.bf16.mxu0 0
    %924 = vmatmul.mubr.bf16.gmra.mrb[0].mxu0 %v870
    %v925 = vpop.f32.mrb[0].mxu0
    %v926 = vadd.f32 %v850, %v925
    %v927 = vpop.f32.mrb[0].mxu0
    %v928 = vpop.f32.mrb[0].mxu0
    %v929 = vadd.f32 %v850, %v928
    %v930 = vpop.f32.mrb[0].mxu0
    %931 = vmatprep.mubr.bf16.mxu0 0
    %932 = vmatmul.mubr.bf16.gmra.mrb[0].mxu0 %v873
    %v933 = vpop.f32.mrb[0].mxu0
    %v934 = vadd.f32 %v850, %v933
    %v935 = vpop.f32.mrb[0].mxu0
    %v936 = vpop.f32.mrb[0].mxu0
    %v937 = vadd.f32 %v850, %v936
    %v938 = vpop.f32.mrb[0].mxu0
    %939 = vdwg.mxu0
    %v940 = vtanh.pop %v910
    %v941 = vtanh.pop %v913
    %v942 = vtanh.pop %v918
    %v943 = vtanh.pop %v921
    %v944 = vtanh.pop %v926
    %v945 = vtanh.pop %v929
    %v946 = vtanh.pop %v934
    %v947 = vtanh.pop %v937
    %v948 = vlaneseq
    %v949 = vshrl.u32 %v948, 7
    %v950 = vsub.s32 0, %v949
    %v951 = vrot.slane %v74, %v950
    %v952 = vmul.f32 %v940, %v951
    %v953 = vmul.f32 %v941, %v951
    %v954 = vmul.f32 %v942, %v951
    %v955 = vmul.f32 %v943, %v951
    %v956 = vmul.f32 %v944, %v951
    %v957 = vmul.f32 %v945, %v951
    %v958 = vmul.f32 %v946, %v951
    %v959 = vmul.f32 %v947, %v951
    %v960 = vsel %vm109, %v952, 0.0
    %961 = vadd.xlane.f32.xlu0 %v960
    %v962 = vpop.xlane.xlu0 %961
    %v963 = vsel %vm109, %v953, 0.0
    %964 = vadd.xlane.f32.xlu0 %v963
    %v965 = vpop.xlane.xlu0 %964
    %v966 = vsel %vm109, %v954, 0.0
    %967 = vadd.xlane.f32.xlu0 %v966
    %v968 = vpop.xlane.xlu0 %967
    %v969 = vsel %vm109, %v955, 0.0
    %970 = vadd.xlane.f32.xlu0 %v969
    %v971 = vpop.xlane.xlu0 %970
    %v972 = vsel %vm109, %v956, 0.0
    %973 = vadd.xlane.f32.xlu0 %v972
    %v974 = vpop.xlane.xlu0 %973
    %v975 = vsel %vm109, %v957, 0.0
    %976 = vadd.xlane.f32.xlu0 %v975
    %v977 = vpop.xlane.xlu0 %976
    %v978 = vsel %vm109, %v958, 0.0
    %979 = vadd.xlane.f32.xlu0 %v978
    %v980 = vpop.xlane.xlu0 %979
    %v981 = vsel %vm109, %v959, 0.0
    %982 = vadd.xlane.f32.xlu0 %v981
    %v983 = vpop.xlane.xlu0 %982
    %v984 = vld [vmem:[%s1] sm:$0xff]
    %v985 = vadd.f32 %v962, %v984
    %v986 = vadd.f32 %v965, %v984
    %v987 = vadd.f32 %v968, %v984
    %v988 = vadd.f32 %v971, %v984
    %v989 = vadd.f32 %v974, %v984
    %v990 = vadd.f32 %v977, %v984
    %v991 = vadd.f32 %v980, %v984
    %v992 = vadd.f32 %v983, %v984
    %vm993 = vcmask 7168
    %v994 = vsel %vm993, %v985, -inf
    %v995 = vsel %vm993, %v986, -inf
    %v996 = vsel %vm993, %v987, -inf
    %v997 = vsel %vm993, %v988, -inf
    %v998 = vsel %vm993, %v989, -inf
    %v999 = vmax.f32 %v994, %v998
    %v1000 = vsel %vm993, %v990, -inf
    %v1001 = vmax.f32 %v995, %v1000
    %v1002 = vsel %vm993, %v991, -inf
    %v1003 = vmax.f32 %v996, %v1002
    %v1004 = vsel %vm993, %v992, -inf
    %v1005 = vmax.f32 %v997, %v1004
    %v1006 = vmax.f32 %v999, %v1001
    %v1007 = vmax.f32 %v1003, %v1005
    %v1008 = vmax.f32 %v1006, %v1007
    %v1009 = vsub.f32 %v985, %v1008
    %v1010 = vsub.f32 %v986, %v1008
    %v1011 = vsub.f32 %v987, %v1008
    %v1012 = vsub.f32 %v988, %v1008
    %v1013 = vsub.f32 %v989, %v1008
    %v1014 = vsub.f32 %v990, %v1008
    %v1015 = vsub.f32 %v991, %v1008
    %v1016 = vsub.f32 %v992, %v1008
    %v1017 = vmul.f32 %v1009, 1.442695
    %v1018 = vpow.pop %v1017
    %v1019 = vmul.f32 %v1010, 1.442695
    %v1020 = vpow.pop %v1019
    %v1021 = vmul.f32 %v1011, 1.442695
    %v1022 = vpow.pop %v1021
    %v1023 = vmul.f32 %v1012, 1.442695
    %v1024 = vpow.pop %v1023
    %v1025 = vmul.f32 %v1013, 1.442695
    %v1026 = vpow.pop %v1025
    %v1027 = vmul.f32 %v1014, 1.442695
    %v1028 = vpow.pop %v1027
    %v1029 = vmul.f32 %v1015, 1.442695
    %v1030 = vpow.pop %v1029
    %v1031 = vmul.f32 %v1016, 1.442695
    %v1032 = vpow.pop %v1031
    %v1033 = vsel %vm993, %v1018, 0.0
    %v1034 = vsel %vm993, %v1020, 0.0
    %v1035 = vadd.f32 %v1033, %v1034
    %v1036 = vsel %vm993, %v1022, 0.0
    %v1037 = vadd.f32 %v1035, %v1036
    %v1038 = vsel %vm993, %v1024, 0.0
    %v1039 = vadd.f32 %v1037, %v1038
    %v1040 = vsel %vm993, %v1026, 0.0
    %v1041 = vadd.f32 %v1039, %v1040
    %v1042 = vsel %vm993, %v1028, 0.0
    %v1043 = vadd.f32 %v1041, %v1042
    %v1044 = vsel %vm993, %v1030, 0.0
    %v1045 = vadd.f32 %v1043, %v1044
    %v1046 = vsel %vm993, %v1032, 0.0
    %v1047 = vadd.f32 %v1045, %v1046
    %v1048 = vrcp.pop %v1047
    %v1049 = vmul.f32 %v1018, %v1048
    %v1050 = vmul.f32 %v1020, %v1048
    %v1051 = vmul.f32 %v1022, %v1048
    %v1052 = vmul.f32 %v1024, %v1048
    %v1053 = vmul.f32 %v1026, %v1048
    %v1054 = vmul.f32 %v1028, %v1048
    %v1055 = vmul.f32 %v1030, %v1048
    %v1056 = vmul.f32 %v1032, %v1048
    %1058 = vset.pattern.permute.xlu0 0
    %1059 = vperm.xlu0 %1058, %v1049
    %v1060 = vpop.permute.xlu0 %1059
    %1063 = vset.pattern.permute.xlu0 0
    %1064 = vperm.xlu0 %1063, %v1050
    %v1065 = vpop.permute.xlu0 %1064
    %1068 = vset.pattern.permute.xlu0 0
    %1069 = vperm.xlu0 %1068, %v1051
    %v1070 = vpop.permute.xlu0 %1069
    %1073 = vset.pattern.permute.xlu0 0
    %1074 = vperm.xlu0 %1073, %v1052
    %v1075 = vpop.permute.xlu0 %1074
    %1078 = vset.pattern.permute.xlu0 0
    %1079 = vperm.xlu0 %1078, %v1053
    %v1080 = vpop.permute.xlu0 %1079
    %1083 = vset.pattern.permute.xlu0 0
    %1084 = vperm.xlu0 %1083, %v1054
    %v1085 = vpop.permute.xlu0 %1084
    %1088 = vset.pattern.permute.xlu0 0
    %1089 = vperm.xlu0 %1088, %v1055
    %v1090 = vpop.permute.xlu0 %1089
    %1093 = vset.pattern.permute.xlu0 0
    %1094 = vperm.xlu0 %1093, %v1056
    %v1095 = vpop.permute.xlu0 %1094
    %v1097 = vmul.f32 %v1060, %v831
    %v1098 = vmul.f32 %v1065, %v832
    %v1099 = vmul.f32 %v1070, %v833
    %v1100 = vmul.f32 %v1075, %v834
    %v1101 = vmul.f32 %v1080, %v835
    %v1102 = vmul.f32 %v1085, %v836
    %v1103 = vmul.f32 %v1090, %v837
    %v1104 = vmul.f32 %v1095, %v838
    %v1105 = vsel %vm109, %v1097, 0.0
    %v1106 = vsel %vm109, %v1098, 0.0
    %v1107 = vadd.f32 %v1105, %v1106
    %v1108 = vsel %vm109, %v1099, 0.0
    %v1109 = vadd.f32 %v1107, %v1108
    %v1110 = vsel %vm109, %v1100, 0.0
    %v1111 = vadd.f32 %v1109, %v1110
    %v1112 = vsel %vm109, %v1101, 0.0
    %v1113 = vadd.f32 %v1111, %v1112
    %v1114 = vsel %vm109, %v1102, 0.0
    %v1115 = vadd.f32 %v1113, %v1114
    %v1116 = vsel %vm109, %v1103, 0.0
    %v1117 = vadd.f32 %v1115, %v1116
    %v1118 = vsel %vm109, %v1104, 0.0
    %v1119 = vadd.f32 %v1117, %v1118
    %1120 = vrot.lane.b32.xlu0 %v825, 64
    %v1121 = vpop.permute.xlu0 %1120
    %v1123 = vsel %vm109, %v1119, %v1121
    %v1124 = vpack.c.bf16 %v1123, %v1123
    %v1125 = vld [vmem:[%s5] sm:$0xf]
    %v1126 = vld [vmem:[%s5 + $0x4] sm:$0xf]
    %v1127 = vld [vmem:[%s5 + $0x8] sm:$0xf]
    %v1128 = vld [vmem:[%s5 + $0xc] sm:$0xf]
    %v1129 = vld [vmem:[%s5 + $0x10] sm:$0xf]
    %v1130 = vld [vmem:[%s5 + $0x14] sm:$0xf]
    %v1131 = vld [vmem:[%s5 + $0x18] sm:$0xf]
    %v1132 = vld [vmem:[%s5 + $0x1c] sm:$0xf]
    %v1133 = vlaneseq
    %v1134 = vshrl.u32 %v1133, 7
    %v1135 = vsub.s32 0, %v1134
    %v1136 = vrot.slane %v75, %v1135
    %v1145 = vunpack.c.l.b16 %v1125
    %v1146 = vunpack.c.l.b16 %v1126
    %v1147 = vunpack.c.l.b16 %v1127
    %v1148 = vunpack.c.l.b16 %v1128
    %v1149 = vunpack.c.l.b16 %v1129
    %v1150 = vunpack.c.l.b16 %v1130
    %v1151 = vunpack.c.l.b16 %v1131
    %v1152 = vunpack.c.l.b16 %v1132
    %v1153 = vpack.c.b16 %v1146, %v1145
    %v1154 = vpack.c.b16 %v1148, %v1147
    %v1155 = vpack.c.b16 %v1150, %v1149
    %v1156 = vpack.c.b16 %v1152, %v1151
    %vm1161 = vcmask 523264
    %v1163 = vsel %vm1161, %v1124, 0
    %1165 = vmatprep.subr.bf16.mxu0 0
    %1166 = vmatpush1.bf16.msra.mxu0 %v1153
    %1167 = vmatprep.subr.bf16.mxu0 0
    %1168 = vmatpush1.bf16.msra.mxu0 %v1154
    %1169 = vmatprep.subr.bf16.mxu0 0
    %1170 = vmatpush1.bf16.msra.mxu0 %v1155
    %1171 = vmatprep.subr.bf16.mxu0 0
    %1172 = vmatpush1.bf16.msra.mxu0 %v1156
    %1173 = vmatprep.subr.bf16.mxu0 0
    %1174 = vmatpush1.bf16.msra.mxu0 0
    %1175 = vmatprep.subr.bf16.mxu0 0
    %1176 = vmatpush1.bf16.msra.mxu0 0
    %1177 = vmatprep.subr.bf16.mxu0 0
    %1178 = vmatpush1.bf16.msra.mxu0 0
    %1179 = vmatprep.subr.bf16.mxu0 0
    %1180 = vmatpush1.bf16.msra.mxu0 0
    %1181 = vmatprep.subr.bf16.mxu0 0
    %1182 = vmatpush1.bf16.msra.mxu0 0
    %1183 = vmatprep.subr.bf16.mxu0 0
    %1184 = vmatpush1.bf16.msra.mxu0 0
    %1185 = vmatprep.subr.bf16.mxu0 0
    %1186 = vmatpush1.bf16.msra.mxu0 0
    %1187 = vmatprep.subr.bf16.mxu0 0
    %1188 = vmatpush1.bf16.msra.mxu0 0
    %1189 = vmatprep.subr.bf16.mxu0 0
    %1190 = vmatpush1.bf16.msra.mxu0 0
    %1191 = vmatprep.subr.bf16.mxu0 0
    %1192 = vmatpush1.bf16.msra.mxu0 0
    %1193 = vmatprep.subr.bf16.mxu0 0
    %1194 = vmatpush1.bf16.msra.mxu0 0
    %1195 = vmatprep.subr.bf16.mxu0 0
    %1196 = vmatpush1.bf16.msra.mxu0 0
    %1197 = vmatprep.mubr.bf16.mxu0 0
    %1198 = vmatmul.mubr.bf16.gmra.mrb[0].mxu0 %v1163
    %v1199 = vpop.f32.mrb[0].mxu0
    %v1200 = vadd.f32 %v1136, %v1199
    %v1201 = vpop.f32.mrb[0].mxu0
    %v1202 = vpop.f32.mrb[0].mxu0
    %v1203 = vpop.f32.mrb[0].mxu0
    %1204 = vdwg.mxu0
    %v1205 = vtanh.pop %v1200
    %v1206 = vpack.c.bf16 %v1205, %v1205
    %v1207 = vld [vmem:[%s6] sm:$0xf]
    %v1208 = vld [vmem:[%s6 + $0x4] sm:$0xf]
    %v1209 = vld [vmem:[%s6 + $0x8] sm:$0xf]
    %v1210 = vld [vmem:[%s6 + $0xc] sm:$0xf]
    %v1211 = vlaneseq
    %v1212 = vshrl.u32 %v1211, 7
    %v1213 = vsub.s32 0, %v1212
    %v1214 = vrot.slane %v76, %v1213
    %v1219 = vunpack.c.l.b16 %v1207
    %v1220 = vunpack.c.l.b16 %v1208
    %v1221 = vunpack.c.l.b16 %v1209
    %v1222 = vunpack.c.l.b16 %v1210
    %v1223 = vpack.c.b16 %v1220, %v1219
    %v1224 = vpack.c.b16 %v1222, %v1221
    %v1228 = vsel %vm109, %v1206, 0
    %1230 = vmatprep.subr.bf16.mxu0 0
    %1231 = vmatpush1.bf16.msra.mxu0 %v1223
    %1232 = vmatprep.subr.bf16.mxu0 0
    %1233 = vmatpush1.bf16.msra.mxu0 %v1224
    %1234 = vmatprep.subr.bf16.mxu0 0
    %1235 = vmatpush1.bf16.msra.mxu0 0
    %1236 = vmatprep.subr.bf16.mxu0 0
    %1237 = vmatpush1.bf16.msra.mxu0 0
    %1238 = vmatprep.subr.bf16.mxu0 0
    %1239 = vmatpush1.bf16.msra.mxu0 0
    %1240 = vmatprep.subr.bf16.mxu0 0
    %1241 = vmatpush1.bf16.msra.mxu0 0
    %1242 = vmatprep.subr.bf16.mxu0 0
    %1243 = vmatpush1.bf16.msra.mxu0 0
    %1244 = vmatprep.subr.bf16.mxu0 0
    %1245 = vmatpush1.bf16.msra.mxu0 0
    %1246 = vmatprep.subr.bf16.mxu0 0
    %1247 = vmatpush1.bf16.msra.mxu0 0
    %1248 = vmatprep.subr.bf16.mxu0 0
    %1249 = vmatpush1.bf16.msra.mxu0 0
    %1250 = vmatprep.subr.bf16.mxu0 0
    %1251 = vmatpush1.bf16.msra.mxu0 0
    %1252 = vmatprep.subr.bf16.mxu0 0
    %1253 = vmatpush1.bf16.msra.mxu0 0
    %1254 = vmatprep.subr.bf16.mxu0 0
    %1255 = vmatpush1.bf16.msra.mxu0 0
    %1256 = vmatprep.subr.bf16.mxu0 0
    %1257 = vmatpush1.bf16.msra.mxu0 0
    %1258 = vmatprep.subr.bf16.mxu0 0
    %1259 = vmatpush1.bf16.msra.mxu0 0
    %1260 = vmatprep.subr.bf16.mxu0 0
    %1261 = vmatpush1.bf16.msra.mxu0 0
    %1262 = vmatprep.mubr.bf16.mxu0 0
    %1263 = vmatmul.mubr.bf16.gmra.mrb[0].mxu0 %v1228
    %v1264 = vpop.f32.mrb[0].mxu0
    %v1265 = vadd.f32 %v1214, %v1264
    %v1266 = vpop.f32.mrb[0].mxu0
    %v1267 = vpop.f32.mrb[0].mxu0
    %v1268 = vpop.f32.mrb[0].mxu0
    %1269 = vdwg.mxu0
    %1270 = vrot.lane.b32.xlu0 %v1050, 1
    %v1271 = vpop.permute.xlu0 %1270
    %1273 = vrot.lane.b32.xlu0 %v1051, 2
    %v1274 = vpop.permute.xlu0 %1273
    %1276 = vrot.lane.b32.xlu0 %v1052, 3
    %v1277 = vpop.permute.xlu0 %1276
    %1279 = vrot.lane.b32.xlu0 %v1053, 4
    %v1280 = vpop.permute.xlu0 %1279
    %1282 = vrot.lane.b32.xlu0 %v1054, 5
    %v1283 = vpop.permute.xlu0 %1282
    %1285 = vrot.lane.b32.xlu0 %v1055, 6
    %v1286 = vpop.permute.xlu0 %1285
    %1288 = vrot.lane.b32.xlu0 %v1056, 7
    %v1289 = vpop.permute.xlu0 %1288
    %v1291 = vsel %vm993, %v1049, %v1271
    %vm1292 = vcmask 15360
    %v1293 = vsel %vm1292, %v1291, %v1274
    %vm1294 = vcmask 23552
    %v1295 = vsel %vm1294, %v1293, %v1277
    %vm1296 = vcmask 31744
    %v1297 = vsel %vm1296, %v1295, %v1280
    %vm1298 = vcmask 39936
    %v1299 = vsel %vm1298, %v1297, %v1283
    %vm1300 = vcmask 48128
    %v1301 = vsel %vm1300, %v1299, %v1286
    %vm1302 = vcmask 56320
    %v1303 = vsel %vm1302, %v1301, %v1289
    %1305 = vrot.lane.b32.xlu0 %v1303, 3
    %v1306 = vpop.permute.xlu0 %1305
    %v1308 = vsel %vm1294, %v1265, %v1306
    %vm1309 = vcmask 89088
    %v1310 = vsel %vm1309, %v1308, 0.0
    %1311 = vst [vmem:[#allocation10] sm:$0xff] %v1310
    // Predicated region
    $region46: #{tpu_custom_call.1} parent=1 // pred_check
      _
    $region47: #{tpu_custom_call.1} parent=1 // pred_check_branch
      %1313 = sbr.rel (0) target = $region49
    $region48: #{tpu_custom_call.1} parent=1 // pred_region
      %s1315 = ssub.s32 128, 128
      %1316 = vsyncadd [#allocation6], %s1315
      %s1318 = sshll.u32 [#allocation10], 4
      %s1319 = int_to_ptr.vmem [resolvable:$true] %s1318
      %1321 = dma.vmem_to_hbm [thread:$0]  %s1319, 128, %s8, [#allocation6]
    $region49: #{tpu_custom_call.1} parent=1 // pred_fallthru
      _
    // Predicated region
    $region50: #{tpu_custom_call.1} parent=1 // pred_check
      _
    $region51: #{tpu_custom_call.1} parent=1 // pred_check_branch
      %1323 = sbr.rel (0) target = $region53
    $region52: #{tpu_custom_call.1} parent=1 // pred_region
      %1324 = dma.done [#allocation6], 128
    $region53: #{tpu_custom_call.1} parent=1 // pred_fallthru
      _
    %1325 = vsyncpa [#allocation5], 1
    %1326 = vsyncpa [#allocation8], 1
    %1327 = vsyncpa [#allocation6], 1

</llo_original>
